<compile_context>
chip_gen: v7x
topology: tpu7x:2x2x1
jax: 0.10.0
libtpu: 0.0.40
codegen_flags: <defaults>
</compile_context>

<pallas_src>
from functools import partial

import numpy as np
import jax
import jax.numpy as jnp
from jax.experimental import pallas as pl
from jax.experimental.pallas import tpu as pltpu


_EPS = 1e-5
_VMEM = pl.BlockSpec(memory_space=pltpu.MemorySpace.VMEM)


def _round_up(v, m):
    return (v + m - 1) // m * m


# ----------------------------------------------------------------------------
# Fused kernel
# ----------------------------------------------------------------------------
def rdb2_kernel(x_ref, coords_ref,
                w1p_ref, g1_ref, be1_ref,
                w2_ref, g2_ref, be2_ref,
                w3_ref, g3_ref, be3_ref,
                bp_ref,
                out_ref, tap_ref,
                *, nhw, img_h, img_w, cin_p, cout_p, tap_dtype):
    """Fused RDB_2 forward: 3x(dilated conv + BN) + residual 1x1 + add + ReLU.

    Layout: channel-major (C, N*H*W), flat spatial on the lane axis.
    tap_ref is a (9*max(cin_p, cout_p), NHW) VMEM scratch holding the im2col
    matrix of the current conv (reused across all three convs).
    """
    x = x_ref[...]                                   # (cin_p, NHW) f32
    yy = coords_ref[0:1, :]                          # (1, NHW) int32 row-in-image
    xx = coords_ref[1:2, :]                          # (1, NHW) int32 col-in-image

    def bounds(d):
        # Boundary predicates for dilation d; computed once and reused by every
        # tap of a conv (and shared by conv2 + conv3, both d=2).
        return ((yy >= d), (yy < img_h - d), (xx >= d), (xx < img_w - d))

    def write_taps(act, c, dil, b):
        """Write the 9 shifted/masked (c, NHW) tap blocks into tap_ref."""
        y_lo, y_hi, x_lo, x_hi = b
        k = 0
        for oy in (-1, 0, 1):
            for ox in (-1, 0, 1):
                dy, dx = oy * dil, ox * dil
                s = dy * img_w + dx                  # flat source offset (dy*W + dx)
                shifted = act if s == 0 else pltpu.roll(act, shift=(-s) % nhw, axis=1)
                preds = []
                if dy < 0:
                    preds.append(y_lo)
                if dy > 0:
                    preds.append(y_hi)
                if dx < 0:
                    preds.append(x_lo)
                if dx > 0:
                    preds.append(x_hi)
                if preds:                            # center tap: no mask at all
                    m = preds[0]
                    for p in preds[1:]:
                        m = jnp.logical_and(m, p)
                    shifted = jnp.where(m, shifted, 0.0)
                tap_ref[pl.ds(k * c, c), :] = shifted.astype(tap_dtype)
                k += 1

    def bn(y, gamma, beta, relu):
        # Single-pass BN (training mode, biased variance): var = E[y^2] - mean^2.
        mean = jnp.mean(y, axis=1, keepdims=True)
        ex2 = jnp.mean(y * y, axis=1, keepdims=True)
        var = ex2 - mean * mean
        scale = gamma * jax.lax.rsqrt(var + _EPS)
        shift = beta - mean * scale
        y = y * scale + shift
        return jnp.maximum(y, 0.0) if relu else y

    # conv1 (d=1) with the residual 1x1 projection folded into the SAME matmul
    # (extra cout_p weight rows, nonzero only in the center-tap column block).
    write_taps(x, cin_p, 1, bounds(1))
    t1 = tap_ref[pl.ds(0, 9 * cin_p), :]
    y1p = jnp.dot(w1p_ref[...], t1, preferred_element_type=jnp.float32)  # (2*cout_p, NHW)
    h1 = bn(y1p[:cout_p, :], g1_ref[...], be1_ref[...], relu=True)
    proj = y1p[cout_p:, :] + bp_ref[...]             # residual path keeps its bias

    # conv2 (d=2)
    b2 = bounds(2)
    write_taps(h1, cout_p, 2, b2)
    t2 = tap_ref[pl.ds(0, 9 * cout_p), :]
    h2 = bn(jnp.dot(w2_ref[...], t2, preferred_element_type=jnp.float32),
            g2_ref[...], be2_ref[...], relu=True)

    # conv3 (d=2)
    write_taps(h2, cout_p, 2, b2)
    t3 = tap_ref[pl.ds(0, 9 * cout_p), :]
    y3 = bn(jnp.dot(w3_ref[...], t3, preferred_element_type=jnp.float32),
            g3_ref[...], be3_ref[...], relu=False)

    out_ref[...] = jnp.maximum(y3 + proj, 0.0)


# ----------------------------------------------------------------------------
# Wrapper
# ----------------------------------------------------------------------------
def _coord_rows(n, h, w):
    f = np.arange(n * h * w)
    yy = (f % (h * w)) // w
    xx = f % w
    return jnp.asarray(np.stack([yy, xx], axis=0).astype(np.int32))   # (2, NHW)


def _vmem_limit_bytes(cin_p, cout_p, nhw, tap_bytes):
    cmax = max(cin_p, cout_p)
    resident = (cin_p * nhw * 4                     # x
                + 8 * nhw * 4                       # coord rows (sublane-padded)
                + 9 * cmax * nhw * tap_bytes        # im2col scratch
                + 6 * cout_p * nhw * 4              # live y1p / h / proj / y3 values
                + cout_p * nhw * 4)                 # out
    est = int(resident * 1.75) + (2 << 20)
    return int(min(max(est, 16 << 20), 128 << 20))


def rdb2_forward(x_nchw, kp, out_ch, tap_dtype=jnp.float32):
    """Pallas forward of RDB_2.  x_nchw: (N, Cin, H, W) -> (N, out_ch, H, W).

    tap_dtype: dtype of the im2col scratch and conv weights fed to the MXU.
    jnp.bfloat16 is recommended on v6e/v7x (halves the dominant VMEM consumer,
    native MXU input); jnp.float32 keeps ~1e-3 agreement with f32 convolution.
    """
    n, cin, h, w = x_nchw.shape
    two_cout_p, nine_cin_p = kp["w1p"].shape
    cout_p, cin_p = two_cout_p // 2, nine_cin_p // 9
    nhw = n * h * w

    # channel-major, lane-dense (C, N*H*W); channels padded to a sublane multiple
    x_cm = jnp.transpose(x_nchw, (1, 0, 2, 3)).reshape(cin, nhw).astype(jnp.float32)
    x_cm = jnp.pad(x_cm, ((0, cin_p - cin), (0, 0)))

    kernel = partial(rdb2_kernel, nhw=nhw, img_h=h, img_w=w,
                     cin_p=cin_p, cout_p=cout_p, tap_dtype=tap_dtype)
    tap_bytes = jnp.dtype(tap_dtype).itemsize
    out = pl.pallas_call(
        kernel,
        out_shape=jax.ShapeDtypeStruct((cout_p, nhw), jnp.float32),
        in_specs=[_VMEM] * 12,
        out_specs=_VMEM,
        scratch_shapes=[pltpu.VMEM((9 * max(cin_p, cout_p), nhw), tap_dtype)],
        compiler_params=pltpu.CompilerParams(
            vmem_limit_bytes=_vmem_limit_bytes(cin_p, cout_p, nhw, tap_bytes)),
    )(x_cm, _coord_rows(n, h, w),
      kp["w1p"].astype(tap_dtype), kp["g1"], kp["be1"],
      kp["w2"].astype(tap_dtype), kp["g2"], kp["be2"],
      kp["w3"].astype(tap_dtype), kp["g3"], kp["be3"],
      kp["b1x1"])

    out = out[:out_ch].reshape(out_ch, n, h, w)
    return jnp.transpose(out, (1, 0, 2, 3))          # back to NCHW


# ----------------------------------------------------------------------------
# Deterministic parameter init (PyTorch shapes -> kernel layout)
# ----------------------------------------------------------------------------
def init_params(key, in_ch, out_ch):
    cin_p = _round_up(in_ch, 8)
    cout_p = _round_up(out_ch, 8)
    ks = jax.random.split(key, 8)

    def conv3x3(k, ci, co, ci_p, co_p):
        bound = 1.0 / np.sqrt(ci * 9)
        w_oihw = jax.random.uniform(k, (co, ci, 3, 3), jnp.float32, -bound, bound)
        b = jax.random.uniform(jax.random.fold_in(k, 1), (co,), jnp.float32, -bound, bound)
        wp = jnp.zeros((co_p, ci_p, 3, 3), jnp.float32).at[:co, :ci].set(w_oihw)
        # (O, I, Kh, Kw) -> (O, Kh, Kw, I) -> (O, 9*I): column k*ci_p + i (tap k, in-ch i)
        w_k = jnp.transpose(wp, (0, 2, 3, 1)).reshape(co_p, 9 * ci_p)
        return w_oihw, b, w_k

    w1_o, b1, w1k = conv3x3(ks[0], in_ch, out_ch, cin_p, cout_p)
    w2_o, b2, w2k = conv3x3(ks[1], out_ch, out_ch, cout_p, cout_p)
    w3_o, b3, w3k = conv3x3(ks[2], out_ch, out_ch, cout_p, cout_p)

    bound = 1.0 / np.sqrt(in_ch)
    wp_o = jax.random.uniform(ks[3], (out_ch, in_ch, 1, 1), jnp.float32, -bound, bound)
    bp = jax.random.uniform(ks[4], (out_ch,), jnp.float32, -bound, bound)

    # Fold the residual 1x1 projection into conv1's matmul: extra cout_p rows
    # whose only nonzeros sit in the center-tap column block (tap index 4).
    w1p = jnp.zeros((2 * cout_p, 9 * cin_p), jnp.float32)
    w1p = w1p.at[:cout_p, :].set(w1k)
    w1p = w1p.at[cout_p:cout_p + out_ch,
                 4 * cin_p:4 * cin_p + in_ch].set(wp_o[:, :, 0, 0])
    bpk = jnp.zeros((cout_p, 1), jnp.float32).at[:out_ch, 0].set(bp)

    def bn_pair(k):
        g = jax.random.uniform(k, (out_ch,), jnp.float32, 0.5, 1.5)
        be = jax.random.uniform(jax.random.fold_in(k, 1), (out_ch,), jnp.float32, -0.5, 0.5)
        gk = jnp.ones((cout_p, 1), jnp.float32).at[:out_ch, 0].set(g)
        bek = jnp.zeros((cout_p, 1), jnp.float32).at[:out_ch, 0].set(be)
        return g, be, gk, bek

    g1, be1, g1k, be1k = bn_pair(ks[5])
    g2, be2, g2k, be2k = bn_pair(ks[6])
    g3, be3, g3k, be3k = bn_pair(ks[7])

    kparams = dict(w1p=w1p, g1=g1k, be1=be1k,
                   w2=w2k, g2=g2k, be2=be2k,
                   w3=w3k, g3=g3k, be3=be3k,
                   b1x1=bpk)
    ref = dict(w1=w1_o, b1=b1, g1=g1, be1=be1,
               w2=w2_o, b2=b2, g2=g2, be2=be2,
               w3=w3_o, b3=b3, g3=g3, be3=be3,
               w1x1=wp_o, b1x1=bp)
    return kparams, ref


# ----------------------------------------------------------------------------
# Pure-JAX reference (NCHW, mirrors the PyTorch module semantics)
# ----------------------------------------------------------------------------
def reference_forward(x, r):
    def conv(x, w, b, dil):
        y = jax.lax.conv_general_dilated(
            x, w, window_strides=(1, 1), padding=[(dil, dil), (dil, dil)],
            rhs_dilation=(dil, dil), dimension_numbers=("NCHW", "OIHW", "NCHW"))
        return y + b.reshape(1, -1, 1, 1)

    def bn(x, g, be):
        mean = x.mean(axis=(0, 2, 3), keepdims=True)
        var = ((x - mean) ** 2).mean(axis=(0, 2, 3), keepdims=True)
        return (x - mean) / jnp.sqrt(var + _EPS) * g.reshape(1, -1, 1, 1) + be.reshape(1, -1, 1, 1)

    h = jax.nn.relu(bn(conv(x, r["w1"], r["b1"], 1), r["g1"], r["be1"]))
    h = jax.nn.relu(bn(conv(h, r["w2"], r["b2"], 2), r["g2"], r["be2"]))
    y = bn(conv(h, r["w3"], r["b3"], 2), r["g3"], r["be3"])
    xp = jax.lax.conv_general_dilated(
        x, r["w1x1"], (1, 1), "VALID",
        dimension_numbers=("NCHW", "OIHW", "NCHW")) + r["b1x1"].reshape(1, -1, 1, 1)
    return jax.nn.relu(y + xp)


# ----------------------------------------------------------------------------
if __name__ == "__main__":
    N, C_IN, C_OUT, H, W = 2, 4, 8, 16, 16

    key = jax.random.PRNGKey(0)
    kx, kp_key = jax.random.split(key)
    x = jax.random.normal(kx, (N, C_IN, H, W), jnp.float32)
    kparams, ref_params = init_params(kp_key, C_IN, C_OUT)

    ref = reference_forward(x, ref_params)

    # f32 taps: full-precision MXU path, tight agreement with the reference.
    fwd_f32 = jax.jit(partial(rdb2_forward, out_ch=C_OUT, tap_dtype=jnp.float32))
    out_f32 = jax.block_until_ready(fwd_f32(x, kparams))
    assert out_f32.shape == (N, C_OUT, H, W), out_f32.shape
    np.testing.assert_allclose(np.asarray(out_f32), np.asarray(ref), atol=1e-3, rtol=1e-3)

    # bf16 taps/weights (v6e/v7x recommendation): loose sanity bound only —
    # bf16 MXU inputs chained through three BatchNorm layers accumulate ~1e-2 error.
    fwd_bf16 = jax.jit(partial(rdb2_forward, out_ch=C_OUT, tap_dtype=jnp.bfloat16))
    out_bf16 = jax.block_until_ready(fwd_bf16(x, kparams))
    assert out_bf16.shape == (N, C_OUT, H, W)
    assert bool(jnp.all(jnp.isfinite(out_bf16)))
    assert float(jnp.max(jnp.abs(out_bf16 - ref))) < 0.25

    print("KERNEL_OK")
</pallas_src>

<mosaic_0001>
module attributes {stable_mosaic.version = 11 : i64} {
  func.func @rdb2_kernel(%arg0: memref<8x512xf32, #tpu.memory_space<vmem>>, %arg1: memref<2x512xi32, #tpu.memory_space<vmem>>, %arg2: memref<16x72xf32, #tpu.memory_space<vmem>>, %arg3: memref<8x1xf32, #tpu.memory_space<vmem>>, %arg4: memref<8x1xf32, #tpu.memory_space<vmem>>, %arg5: memref<8x72xf32, #tpu.memory_space<vmem>>, %arg6: memref<8x1xf32, #tpu.memory_space<vmem>>, %arg7: memref<8x1xf32, #tpu.memory_space<vmem>>, %arg8: memref<8x72xf32, #tpu.memory_space<vmem>>, %arg9: memref<8x1xf32, #tpu.memory_space<vmem>>, %arg10: memref<8x1xf32, #tpu.memory_space<vmem>>, %arg11: memref<8x1xf32, #tpu.memory_space<vmem>>, %arg12: memref<8x512xf32, #tpu.memory_space<vmem>>, %arg13: memref<72x512xf32, #tpu.memory_space<vmem>>) attributes {dimension_semantics = [], scalar_prefetch = 0 : i64, scratch_operands = 1 : i64, tpu.core_type = #tpu.core_type<tc>} {
    %c0 = arith.constant 0 : index
    %c0_0 = arith.constant 0 : index
    %0 = vector.load %arg0[%c0, %c0_0] : memref<8x512xf32, #tpu.memory_space<vmem>>, vector<8x512xf32>
    %c0_1 = arith.constant 0 : index
    %c0_2 = arith.constant 0 : index
    %1 = vector.load %arg1[%c0_1, %c0_2] : memref<2x512xi32, #tpu.memory_space<vmem>>, vector<1x512xi32>
    %c1 = arith.constant 1 : index
    %c0_3 = arith.constant 0 : index
    %2 = vector.load %arg1[%c1, %c0_3] : memref<2x512xi32, #tpu.memory_space<vmem>>, vector<1x512xi32>
    %c1_i32 = arith.constant 1 : i32
    %3 = vector.broadcast %c1_i32 : i32 to vector<1x512xi32>
    %4 = arith.cmpi sge, %1, %3 : vector<1x512xi32>
    %c15_i32 = arith.constant 15 : i32
    %5 = vector.broadcast %c15_i32 : i32 to vector<1x512xi32>
    %6 = arith.cmpi slt, %1, %5 : vector<1x512xi32>
    %c1_i32_4 = arith.constant 1 : i32
    %7 = vector.broadcast %c1_i32_4 : i32 to vector<1x512xi32>
    %8 = arith.cmpi sge, %2, %7 : vector<1x512xi32>
    %c15_i32_5 = arith.constant 15 : i32
    %9 = vector.broadcast %c15_i32_5 : i32 to vector<1x512xi32>
    %10 = arith.cmpi slt, %2, %9 : vector<1x512xi32>
    %c17_i32 = arith.constant 17 : i32
    %11 = tpu.dynamic_rotate %0 by %c17_i32 dim 1 : vector<8x512xf32>, i32 -> vector<8x512xf32>
    %12 = arith.andi %4, %8 : vector<1x512xi1>
    %cst = arith.constant 0.000000e+00 : f32
    %13 = vector.shape_cast %12 : vector<1x512xi1> to vector<1x512xi1>
    %14 = vector.broadcast %13 : vector<1x512xi1> to vector<8x512xi1>
    %15 = vector.broadcast %cst : f32 to vector<8x512xf32>
    %16 = arith.select %14, %11, %15 : vector<8x512xi1>, vector<8x512xf32>
    %c0_6 = arith.constant 0 : index
    %c0_7 = arith.constant 0 : index
    %17 = vector.load %arg13[%c0_6, %c0_7] : memref<72x512xf32, #tpu.memory_space<vmem>>, vector<8x512xf32>
    tpu.vector_store %arg13[%c0_6, %c0_7], %16 {strides = array<i32>} : memref<72x512xf32, #tpu.memory_space<vmem>>, vector<8x512xf32>,
    %c16_i32 = arith.constant 16 : i32
    %18 = tpu.dynamic_rotate %0 by %c16_i32 dim 1 : vector<8x512xf32>, i32 -> vector<8x512xf32>
    %cst_8 = arith.constant 0.000000e+00 : f32
    %19 = vector.shape_cast %4 : vector<1x512xi1> to vector<1x512xi1>
    %20 = vector.broadcast %19 : vector<1x512xi1> to vector<8x512xi1>
    %21 = vector.broadcast %cst_8 : f32 to vector<8x512xf32>
    %22 = arith.select %20, %18, %21 : vector<8x512xi1>, vector<8x512xf32>
    %c8 = arith.constant 8 : index
    %c0_9 = arith.constant 0 : index
    %23 = vector.load %arg13[%c8, %c0_9] : memref<72x512xf32, #tpu.memory_space<vmem>>, vector<8x512xf32>
    tpu.vector_store %arg13[%c8, %c0_9], %22 {strides = array<i32>} : memref<72x512xf32, #tpu.memory_space<vmem>>, vector<8x512xf32>,
    %c15_i32_10 = arith.constant 15 : i32
    %24 = tpu.dynamic_rotate %0 by %c15_i32_10 dim 1 : vector<8x512xf32>, i32 -> vector<8x512xf32>
    %25 = arith.andi %4, %10 : vector<1x512xi1>
    %cst_11 = arith.constant 0.000000e+00 : f32
    %26 = vector.shape_cast %25 : vector<1x512xi1> to vector<1x512xi1>
    %27 = vector.broadcast %26 : vector<1x512xi1> to vector<8x512xi1>
    %28 = vector.broadcast %cst_11 : f32 to vector<8x512xf32>
    %29 = arith.select %27, %24, %28 : vector<8x512xi1>, vector<8x512xf32>
    %c16 = arith.constant 16 : index
    %c0_12 = arith.constant 0 : index
    %30 = vector.load %arg13[%c16, %c0_12] : memref<72x512xf32, #tpu.memory_space<vmem>>, vector<8x512xf32>
    tpu.vector_store %arg13[%c16, %c0_12], %29 {strides = array<i32>} : memref<72x512xf32, #tpu.memory_space<vmem>>, vector<8x512xf32>,
    %c1_i32_13 = arith.constant 1 : i32
    %31 = tpu.dynamic_rotate %0 by %c1_i32_13 dim 1 : vector<8x512xf32>, i32 -> vector<8x512xf32>
    %cst_14 = arith.constant 0.000000e+00 : f32
    %32 = vector.shape_cast %8 : vector<1x512xi1> to vector<1x512xi1>
    %33 = vector.broadcast %32 : vector<1x512xi1> to vector<8x512xi1>
    %34 = vector.broadcast %cst_14 : f32 to vector<8x512xf32>
    %35 = arith.select %33, %31, %34 : vector<8x512xi1>, vector<8x512xf32>
    %c24 = arith.constant 24 : index
    %c0_15 = arith.constant 0 : index
    %36 = vector.load %arg13[%c24, %c0_15] : memref<72x512xf32, #tpu.memory_space<vmem>>, vector<8x512xf32>
    tpu.vector_store %arg13[%c24, %c0_15], %35 {strides = array<i32>} : memref<72x512xf32, #tpu.memory_space<vmem>>, vector<8x512xf32>,
    %c32 = arith.constant 32 : index
    %c0_16 = arith.constant 0 : index
    %37 = vector.load %arg13[%c32, %c0_16] : memref<72x512xf32, #tpu.memory_space<vmem>>, vector<8x512xf32>
    tpu.vector_store %arg13[%c32, %c0_16], %0 {strides = array<i32>} : memref<72x512xf32, #tpu.memory_space<vmem>>, vector<8x512xf32>,
    %c511_i32 = arith.constant 511 : i32
    %38 = tpu.dynamic_rotate %0 by %c511_i32 dim 1 : vector<8x512xf32>, i32 -> vector<8x512xf32>
    %cst_17 = arith.constant 0.000000e+00 : f32
    %39 = vector.shape_cast %10 : vector<1x512xi1> to vector<1x512xi1>
    %40 = vector.broadcast %39 : vector<1x512xi1> to vector<8x512xi1>
    %41 = vector.broadcast %cst_17 : f32 to vector<8x512xf32>
    %42 = arith.select %40, %38, %41 : vector<8x512xi1>, vector<8x512xf32>
    %c40 = arith.constant 40 : index
    %c0_18 = arith.constant 0 : index
    %43 = vector.load %arg13[%c40, %c0_18] : memref<72x512xf32, #tpu.memory_space<vmem>>, vector<8x512xf32>
    tpu.vector_store %arg13[%c40, %c0_18], %42 {strides = array<i32>} : memref<72x512xf32, #tpu.memory_space<vmem>>, vector<8x512xf32>,
    %c497_i32 = arith.constant 497 : i32
    %44 = tpu.dynamic_rotate %0 by %c497_i32 dim 1 : vector<8x512xf32>, i32 -> vector<8x512xf32>
    %45 = arith.andi %6, %8 : vector<1x512xi1>
    %cst_19 = arith.constant 0.000000e+00 : f32
    %46 = vector.shape_cast %45 : vector<1x512xi1> to vector<1x512xi1>
    %47 = vector.broadcast %46 : vector<1x512xi1> to vector<8x512xi1>
    %48 = vector.broadcast %cst_19 : f32 to vector<8x512xf32>
    %49 = arith.select %47, %44, %48 : vector<8x512xi1>, vector<8x512xf32>
    %c48 = arith.constant 48 : index
    %c0_20 = arith.constant 0 : index
    %50 = vector.load %arg13[%c48, %c0_20] : memref<72x512xf32, #tpu.memory_space<vmem>>, vector<8x512xf32>
    tpu.vector_store %arg13[%c48, %c0_20], %49 {strides = array<i32>} : memref<72x512xf32, #tpu.memory_space<vmem>>, vector<8x512xf32>,
    %c496_i32 = arith.constant 496 : i32
    %51 = tpu.dynamic_rotate %0 by %c496_i32 dim 1 : vector<8x512xf32>, i32 -> vector<8x512xf32>
    %cst_21 = arith.constant 0.000000e+00 : f32
    %52 = vector.shape_cast %6 : vector<1x512xi1> to vector<1x512xi1>
    %53 = vector.broadcast %52 : vector<1x512xi1> to vector<8x512xi1>
    %54 = vector.broadcast %cst_21 : f32 to vector<8x512xf32>
    %55 = arith.select %53, %51, %54 : vector<8x512xi1>, vector<8x512xf32>
    %c56 = arith.constant 56 : index
    %c0_22 = arith.constant 0 : index
    %56 = vector.load %arg13[%c56, %c0_22] : memref<72x512xf32, #tpu.memory_space<vmem>>, vector<8x512xf32>
    tpu.vector_store %arg13[%c56, %c0_22], %55 {strides = array<i32>} : memref<72x512xf32, #tpu.memory_space<vmem>>, vector<8x512xf32>,
    %c495_i32 = arith.constant 495 : i32
    %57 = tpu.dynamic_rotate %0 by %c495_i32 dim 1 : vector<8x512xf32>, i32 -> vector<8x512xf32>
    %58 = arith.andi %6, %10 : vector<1x512xi1>
    %cst_23 = arith.constant 0.000000e+00 : f32
    %59 = vector.shape_cast %58 : vector<1x512xi1> to vector<1x512xi1>
    %60 = vector.broadcast %59 : vector<1x512xi1> to vector<8x512xi1>
    %61 = vector.broadcast %cst_23 : f32 to vector<8x512xf32>
    %62 = arith.select %60, %57, %61 : vector<8x512xi1>, vector<8x512xf32>
    %c64 = arith.constant 64 : index
    %c0_24 = arith.constant 0 : index
    %63 = vector.load %arg13[%c64, %c0_24] : memref<72x512xf32, #tpu.memory_space<vmem>>, vector<8x512xf32>
    tpu.vector_store %arg13[%c64, %c0_24], %62 {strides = array<i32>} : memref<72x512xf32, #tpu.memory_space<vmem>>, vector<8x512xf32>,
    %c0_25 = arith.constant 0 : index
    %c0_26 = arith.constant 0 : index
    %64 = vector.load %arg13[%c0_25, %c0_26] : memref<72x512xf32, #tpu.memory_space<vmem>>, vector<72x512xf32>
    %c0_27 = arith.constant 0 : index
    %c0_28 = arith.constant 0 : index
    %65 = vector.load %arg2[%c0_27, %c0_28] : memref<16x72xf32, #tpu.memory_space<vmem>>, vector<16x72xf32>
    %cst_29 = arith.constant dense<0.000000e+00> : vector<16x512xf32>
    %66 = tpu.matmul %65, %64, %cst_29 {dimension_numbers = #tpu.dot_dimension_numbers<[1], [0], [0], [1], [0, 0, 1, 1], [], []>} : vector<16x72xf32>, vector<72x512xf32>, vector<16x512xf32> -> vector<16x512xf32>
    %67 = vector.extract_strided_slice %66 {offsets = [0, 0], sizes = [8, 512], strides = [1, 1]} : vector<16x512xf32> to vector<8x512xf32>
    %c0_30 = arith.constant 0 : index
    %c0_31 = arith.constant 0 : index
    %68 = vector.load %arg3[%c0_30, %c0_31] : memref<8x1xf32, #tpu.memory_space<vmem>>, vector<8x1xf32>
    %c0_32 = arith.constant 0 : index
    %c0_33 = arith.constant 0 : index
    %69 = vector.load %arg4[%c0_32, %c0_33] : memref<8x1xf32, #tpu.memory_space<vmem>>, vector<8x1xf32>
    %cst_34 = arith.constant dense<0.000000e+00> : vector<8xf32>
    %70 = vector.multi_reduction <add>, %67, %cst_34 [1] : vector<8x512xf32> to vector<8xf32>
    %71 = vector.shape_cast %70 : vector<8xf32> to vector<8x1xf32>
    %cst_35 = arith.constant 5.120000e+02 : f32
    %72 = vector.broadcast %cst_35 : f32 to vector<8x1xf32>
    %73 = arith.divf %71, %72 : vector<8x1xf32>
    %74 = arith.mulf %67, %67 : vector<8x512xf32>
    %cst_36 = arith.constant dense<0.000000e+00> : vector<8xf32>
    %75 = vector.multi_reduction <add>, %74, %cst_36 [1] : vector<8x512xf32> to vector<8xf32>
    %76 = vector.shape_cast %75 : vector<8xf32> to vector<8x1xf32>
    %cst_37 = arith.constant 5.120000e+02 : f32
    %77 = vector.broadcast %cst_37 : f32 to vector<8x1xf32>
    %78 = arith.divf %76, %77 : vector<8x1xf32>
    %79 = arith.mulf %73, %73 : vector<8x1xf32>
    %80 = arith.subf %78, %79 : vector<8x1xf32>
    %cst_38 = arith.constant 9.99999974E-6 : f32
    %81 = vector.broadcast %cst_38 : f32 to vector<8x1xf32>
    %82 = arith.addf %80, %81 : vector<8x1xf32>
    %83 = math.rsqrt %82 : vector<8x1xf32>
    %84 = arith.mulf %68, %83 : vector<8x1xf32>
    %85 = arith.mulf %73, %84 : vector<8x1xf32>
    %86 = arith.subf %69, %85 : vector<8x1xf32>
    %87 = vector.broadcast %84 : vector<8x1xf32> to vector<8x512xf32>
    %88 = arith.mulf %67, %87 : vector<8x512xf32>
    %89 = vector.broadcast %86 : vector<8x1xf32> to vector<8x512xf32>
    %90 = arith.addf %88, %89 : vector<8x512xf32>
    %cst_39 = arith.constant 0.000000e+00 : f32
    %91 = vector.broadcast %cst_39 : f32 to vector<8x512xf32>
    %92 = arith.maximumf %90, %91 : vector<8x512xf32>
    %93 = vector.extract_strided_slice %66 {offsets = [8, 0], sizes = [8, 512], strides = [1, 1]} : vector<16x512xf32> to vector<8x512xf32>
    %c0_40 = arith.constant 0 : index
    %c0_41 = arith.constant 0 : index
    %94 = vector.load %arg11[%c0_40, %c0_41] : memref<8x1xf32, #tpu.memory_space<vmem>>, vector<8x1xf32>
    %95 = vector.broadcast %94 : vector<8x1xf32> to vector<8x512xf32>
    %96 = arith.addf %93, %95 : vector<8x512xf32>
    %c2_i32 = arith.constant 2 : i32
    %97 = vector.broadcast %c2_i32 : i32 to vector<1x512xi32>
    %98 = arith.cmpi sge, %1, %97 : vector<1x512xi32>
    %c14_i32 = arith.constant 14 : i32
    %99 = vector.broadcast %c14_i32 : i32 to vector<1x512xi32>
    %100 = arith.cmpi slt, %1, %99 : vector<1x512xi32>
    %c2_i32_42 = arith.constant 2 : i32
    %101 = vector.broadcast %c2_i32_42 : i32 to vector<1x512xi32>
    %102 = arith.cmpi sge, %2, %101 : vector<1x512xi32>
    %c14_i32_43 = arith.constant 14 : i32
    %103 = vector.broadcast %c14_i32_43 : i32 to vector<1x512xi32>
    %104 = arith.cmpi slt, %2, %103 : vector<1x512xi32>
    %c34_i32 = arith.constant 34 : i32
    %105 = tpu.dynamic_rotate %92 by %c34_i32 dim 1 : vector<8x512xf32>, i32 -> vector<8x512xf32>
    %106 = arith.andi %98, %102 : vector<1x512xi1>
    %cst_44 = arith.constant 0.000000e+00 : f32
    %107 = vector.shape_cast %106 : vector<1x512xi1> to vector<1x512xi1>
    %108 = vector.broadcast %107 : vector<1x512xi1> to vector<8x512xi1>
    %109 = vector.broadcast %cst_44 : f32 to vector<8x512xf32>
    %110 = arith.select %108, %105, %109 : vector<8x512xi1>, vector<8x512xf32>
    %c0_45 = arith.constant 0 : index
    %c0_46 = arith.constant 0 : index
    %111 = vector.load %arg13[%c0_45, %c0_46] : memref<72x512xf32, #tpu.memory_space<vmem>>, vector<8x512xf32>
    tpu.vector_store %arg13[%c0_45, %c0_46], %110 {strides = array<i32>} : memref<72x512xf32, #tpu.memory_space<vmem>>, vector<8x512xf32>,
    %c32_i32 = arith.constant 32 : i32
    %112 = tpu.dynamic_rotate %92 by %c32_i32 dim 1 : vector<8x512xf32>, i32 -> vector<8x512xf32>
    %cst_47 = arith.constant 0.000000e+00 : f32
    %113 = vector.shape_cast %98 : vector<1x512xi1> to vector<1x512xi1>
    %114 = vector.broadcast %113 : vector<1x512xi1> to vector<8x512xi1>
    %115 = vector.broadcast %cst_47 : f32 to vector<8x512xf32>
    %116 = arith.select %114, %112, %115 : vector<8x512xi1>, vector<8x512xf32>
    %c8_48 = arith.constant 8 : index
    %c0_49 = arith.constant 0 : index
    %117 = vector.load %arg13[%c8_48, %c0_49] : memref<72x512xf32, #tpu.memory_space<vmem>>, vector<8x512xf32>
    tpu.vector_store %arg13[%c8_48, %c0_49], %116 {strides = array<i32>} : memref<72x512xf32, #tpu.memory_space<vmem>>, vector<8x512xf32>,
    %c30_i32 = arith.constant 30 : i32
    %118 = tpu.dynamic_rotate %92 by %c30_i32 dim 1 : vector<8x512xf32>, i32 -> vector<8x512xf32>
    %119 = arith.andi %98, %104 : vector<1x512xi1>
    %cst_50 = arith.constant 0.000000e+00 : f32
    %120 = vector.shape_cast %119 : vector<1x512xi1> to vector<1x512xi1>
    %121 = vector.broadcast %120 : vector<1x512xi1> to vector<8x512xi1>
    %122 = vector.broadcast %cst_50 : f32 to vector<8x512xf32>
    %123 = arith.select %121, %118, %122 : vector<8x512xi1>, vector<8x512xf32>
    %c16_51 = arith.constant 16 : index
    %c0_52 = arith.constant 0 : index
    %124 = vector.load %arg13[%c16_51, %c0_52] : memref<72x512xf32, #tpu.memory_space<vmem>>, vector<8x512xf32>
    tpu.vector_store %arg13[%c16_51, %c0_52], %123 {strides = array<i32>} : memref<72x512xf32, #tpu.memory_space<vmem>>, vector<8x512xf32>,
    %c2_i32_53 = arith.constant 2 : i32
    %125 = tpu.dynamic_rotate %92 by %c2_i32_53 dim 1 : vector<8x512xf32>, i32 -> vector<8x512xf32>
    %cst_54 = arith.constant 0.000000e+00 : f32
    %126 = vector.shape_cast %102 : vector<1x512xi1> to vector<1x512xi1>
    %127 = vector.broadcast %126 : vector<1x512xi1> to vector<8x512xi1>
    %128 = vector.broadcast %cst_54 : f32 to vector<8x512xf32>
    %129 = arith.select %127, %125, %128 : vector<8x512xi1>, vector<8x512xf32>
    %c24_55 = arith.constant 24 : index
    %c0_56 = arith.constant 0 : index
    %130 = vector.load %arg13[%c24_55, %c0_56] : memref<72x512xf32, #tpu.memory_space<vmem>>, vector<8x512xf32>
    tpu.vector_store %arg13[%c24_55, %c0_56], %129 {strides = array<i32>} : memref<72x512xf32, #tpu.memory_space<vmem>>, vector<8x512xf32>,
    %c32_57 = arith.constant 32 : index
    %c0_58 = arith.constant 0 : index
    %131 = vector.load %arg13[%c32_57, %c0_58] : memref<72x512xf32, #tpu.memory_space<vmem>>, vector<8x512xf32>
    tpu.vector_store %arg13[%c32_57, %c0_58], %92 {strides = array<i32>} : memref<72x512xf32, #tpu.memory_space<vmem>>, vector<8x512xf32>,
    %c510_i32 = arith.constant 510 : i32
    %132 = tpu.dynamic_rotate %92 by %c510_i32 dim 1 : vector<8x512xf32>, i32 -> vector<8x512xf32>
    %cst_59 = arith.constant 0.000000e+00 : f32
    %133 = vector.shape_cast %104 : vector<1x512xi1> to vector<1x512xi1>
    %134 = vector.broadcast %133 : vector<1x512xi1> to vector<8x512xi1>
    %135 = vector.broadcast %cst_59 : f32 to vector<8x512xf32>
    %136 = arith.select %134, %132, %135 : vector<8x512xi1>, vector<8x512xf32>
    %c40_60 = arith.constant 40 : index
    %c0_61 = arith.constant 0 : index
    %137 = vector.load %arg13[%c40_60, %c0_61] : memref<72x512xf32, #tpu.memory_space<vmem>>, vector<8x512xf32>
    tpu.vector_store %arg13[%c40_60, %c0_61], %136 {strides = array<i32>} : memref<72x512xf32, #tpu.memory_space<vmem>>, vector<8x512xf32>,
    %c482_i32 = arith.constant 482 : i32
    %138 = tpu.dynamic_rotate %92 by %c482_i32 dim 1 : vector<8x512xf32>, i32 -> vector<8x512xf32>
    %139 = arith.andi %100, %102 : vector<1x512xi1>
    %cst_62 = arith.constant 0.000000e+00 : f32
    %140 = vector.shape_cast %139 : vector<1x512xi1> to vector<1x512xi1>
    %141 = vector.broadcast %140 : vector<1x512xi1> to vector<8x512xi1>
    %142 = vector.broadcast %cst_62 : f32 to vector<8x512xf32>
    %143 = arith.select %141, %138, %142 : vector<8x512xi1>, vector<8x512xf32>
    %c48_63 = arith.constant 48 : index
    %c0_64 = arith.constant 0 : index
    %144 = vector.load %arg13[%c48_63, %c0_64] : memref<72x512xf32, #tpu.memory_space<vmem>>, vector<8x512xf32>
    tpu.vector_store %arg13[%c48_63, %c0_64], %143 {strides = array<i32>} : memref<72x512xf32, #tpu.memory_space<vmem>>, vector<8x512xf32>,
    %c480_i32 = arith.constant 480 : i32
    %145 = tpu.dynamic_rotate %92 by %c480_i32 dim 1 : vector<8x512xf32>, i32 -> vector<8x512xf32>
    %cst_65 = arith.constant 0.000000e+00 : f32
    %146 = vector.shape_cast %100 : vector<1x512xi1> to vector<1x512xi1>
    %147 = vector.broadcast %146 : vector<1x512xi1> to vector<8x512xi1>
    %148 = vector.broadcast %cst_65 : f32 to vector<8x512xf32>
    %149 = arith.select %147, %145, %148 : vector<8x512xi1>, vector<8x512xf32>
    %c56_66 = arith.constant 56 : index
    %c0_67 = arith.constant 0 : index
    %150 = vector.load %arg13[%c56_66, %c0_67] : memref<72x512xf32, #tpu.memory_space<vmem>>, vector<8x512xf32>
    tpu.vector_store %arg13[%c56_66, %c0_67], %149 {strides = array<i32>} : memref<72x512xf32, #tpu.memory_space<vmem>>, vector<8x512xf32>,
    %c478_i32 = arith.constant 478 : i32
    %151 = tpu.dynamic_rotate %92 by %c478_i32 dim 1 : vector<8x512xf32>, i32 -> vector<8x512xf32>
    %152 = arith.andi %100, %104 : vector<1x512xi1>
    %cst_68 = arith.constant 0.000000e+00 : f32
    %153 = vector.shape_cast %152 : vector<1x512xi1> to vector<1x512xi1>
    %154 = vector.broadcast %153 : vector<1x512xi1> to vector<8x512xi1>
    %155 = vector.broadcast %cst_68 : f32 to vector<8x512xf32>
    %156 = arith.select %154, %151, %155 : vector<8x512xi1>, vector<8x512xf32>
    %c64_69 = arith.constant 64 : index
    %c0_70 = arith.constant 0 : index
    %157 = vector.load %arg13[%c64_69, %c0_70] : memref<72x512xf32, #tpu.memory_space<vmem>>, vector<8x512xf32>
    tpu.vector_store %arg13[%c64_69, %c0_70], %156 {strides = array<i32>} : memref<72x512xf32, #tpu.memory_space<vmem>>, vector<8x512xf32>,
    %c0_71 = arith.constant 0 : index
    %c0_72 = arith.constant 0 : index
    %158 = vector.load %arg13[%c0_71, %c0_72] : memref<72x512xf32, #tpu.memory_space<vmem>>, vector<72x512xf32>
    %c0_73 = arith.constant 0 : index
    %c0_74 = arith.constant 0 : index
    %159 = vector.load %arg5[%c0_73, %c0_74] : memref<8x72xf32, #tpu.memory_space<vmem>>, vector<8x72xf32>
    %cst_75 = arith.constant dense<0.000000e+00> : vector<8x512xf32>
    %160 = tpu.matmul %159, %158, %cst_75 {dimension_numbers = #tpu.dot_dimension_numbers<[1], [0], [0], [1], [0, 0, 1, 1], [], []>} : vector<8x72xf32>, vector<72x512xf32>, vector<8x512xf32> -> vector<8x512xf32>
    %c0_76 = arith.constant 0 : index
    %c0_77 = arith.constant 0 : index
    %161 = vector.load %arg6[%c0_76, %c0_77] : memref<8x1xf32, #tpu.memory_space<vmem>>, vector<8x1xf32>
    %c0_78 = arith.constant 0 : index
    %c0_79 = arith.constant 0 : index
    %162 = vector.load %arg7[%c0_78, %c0_79] : memref<8x1xf32, #tpu.memory_space<vmem>>, vector<8x1xf32>
    %cst_80 = arith.constant dense<0.000000e+00> : vector<8xf32>
    %163 = vector.multi_reduction <add>, %160, %cst_80 [1] : vector<8x512xf32> to vector<8xf32>
    %164 = vector.shape_cast %163 : vector<8xf32> to vector<8x1xf32>
    %cst_81 = arith.constant 5.120000e+02 : f32
    %165 = vector.broadcast %cst_81 : f32 to vector<8x1xf32>
    %166 = arith.divf %164, %165 : vector<8x1xf32>
    %167 = arith.mulf %160, %160 : vector<8x512xf32>
    %cst_82 = arith.constant dense<0.000000e+00> : vector<8xf32>
    %168 = vector.multi_reduction <add>, %167, %cst_82 [1] : vector<8x512xf32> to vector<8xf32>
    %169 = vector.shape_cast %168 : vector<8xf32> to vector<8x1xf32>
    %cst_83 = arith.constant 5.120000e+02 : f32
    %170 = vector.broadcast %cst_83 : f32 to vector<8x1xf32>
    %171 = arith.divf %169, %170 : vector<8x1xf32>
    %172 = arith.mulf %166, %166 : vector<8x1xf32>
    %173 = arith.subf %171, %172 : vector<8x1xf32>
    %cst_84 = arith.constant 9.99999974E-6 : f32
    %174 = vector.broadcast %cst_84 : f32 to vector<8x1xf32>
    %175 = arith.addf %173, %174 : vector<8x1xf32>
    %176 = math.rsqrt %175 : vector<8x1xf32>
    %177 = arith.mulf %161, %176 : vector<8x1xf32>
    %178 = arith.mulf %166, %177 : vector<8x1xf32>
    %179 = arith.subf %162, %178 : vector<8x1xf32>
    %180 = vector.broadcast %177 : vector<8x1xf32> to vector<8x512xf32>
    %181 = arith.mulf %160, %180 : vector<8x512xf32>
    %182 = vector.broadcast %179 : vector<8x1xf32> to vector<8x512xf32>
    %183 = arith.addf %181, %182 : vector<8x512xf32>
    %cst_85 = arith.constant 0.000000e+00 : f32
    %184 = vector.broadcast %cst_85 : f32 to vector<8x512xf32>
    %185 = arith.maximumf %183, %184 : vector<8x512xf32>
    %c34_i32_86 = arith.constant 34 : i32
    %186 = tpu.dynamic_rotate %185 by %c34_i32_86 dim 1 : vector<8x512xf32>, i32 -> vector<8x512xf32>
    %187 = arith.andi %98, %102 : vector<1x512xi1>
    %cst_87 = arith.constant 0.000000e+00 : f32
    %188 = vector.shape_cast %187 : vector<1x512xi1> to vector<1x512xi1>
    %189 = vector.broadcast %188 : vector<1x512xi1> to vector<8x512xi1>
    %190 = vector.broadcast %cst_87 : f32 to vector<8x512xf32>
    %191 = arith.select %189, %186, %190 : vector<8x512xi1>, vector<8x512xf32>
    %c0_88 = arith.constant 0 : index
    %c0_89 = arith.constant 0 : index
    %192 = vector.load %arg13[%c0_88, %c0_89] : memref<72x512xf32, #tpu.memory_space<vmem>>, vector<8x512xf32>
    tpu.vector_store %arg13[%c0_88, %c0_89], %191 {strides = array<i32>} : memref<72x512xf32, #tpu.memory_space<vmem>>, vector<8x512xf32>,
    %c32_i32_90 = arith.constant 32 : i32
    %193 = tpu.dynamic_rotate %185 by %c32_i32_90 dim 1 : vector<8x512xf32>, i32 -> vector<8x512xf32>
    %cst_91 = arith.constant 0.000000e+00 : f32
    %194 = vector.shape_cast %98 : vector<1x512xi1> to vector<1x512xi1>
    %195 = vector.broadcast %194 : vector<1x512xi1> to vector<8x512xi1>
    %196 = vector.broadcast %cst_91 : f32 to vector<8x512xf32>
    %197 = arith.select %195, %193, %196 : vector<8x512xi1>, vector<8x512xf32>
    %c8_92 = arith.constant 8 : index
    %c0_93 = arith.constant 0 : index
    %198 = vector.load %arg13[%c8_92, %c0_93] : memref<72x512xf32, #tpu.memory_space<vmem>>, vector<8x512xf32>
    tpu.vector_store %arg13[%c8_92, %c0_93], %197 {strides = array<i32>} : memref<72x512xf32, #tpu.memory_space<vmem>>, vector<8x512xf32>,
    %c30_i32_94 = arith.constant 30 : i32
    %199 = tpu.dynamic_rotate %185 by %c30_i32_94 dim 1 : vector<8x512xf32>, i32 -> vector<8x512xf32>
    %200 = arith.andi %98, %104 : vector<1x512xi1>
    %cst_95 = arith.constant 0.000000e+00 : f32
    %201 = vector.shape_cast %200 : vector<1x512xi1> to vector<1x512xi1>
    %202 = vector.broadcast %201 : vector<1x512xi1> to vector<8x512xi1>
    %203 = vector.broadcast %cst_95 : f32 to vector<8x512xf32>
    %204 = arith.select %202, %199, %203 : vector<8x512xi1>, vector<8x512xf32>
    %c16_96 = arith.constant 16 : index
    %c0_97 = arith.constant 0 : index
    %205 = vector.load %arg13[%c16_96, %c0_97] : memref<72x512xf32, #tpu.memory_space<vmem>>, vector<8x512xf32>
    tpu.vector_store %arg13[%c16_96, %c0_97], %204 {strides = array<i32>} : memref<72x512xf32, #tpu.memory_space<vmem>>, vector<8x512xf32>,
    %c2_i32_98 = arith.constant 2 : i32
    %206 = tpu.dynamic_rotate %185 by %c2_i32_98 dim 1 : vector<8x512xf32>, i32 -> vector<8x512xf32>
    %cst_99 = arith.constant 0.000000e+00 : f32
    %207 = vector.shape_cast %102 : vector<1x512xi1> to vector<1x512xi1>
    %208 = vector.broadcast %207 : vector<1x512xi1> to vector<8x512xi1>
    %209 = vector.broadcast %cst_99 : f32 to vector<8x512xf32>
    %210 = arith.select %208, %206, %209 : vector<8x512xi1>, vector<8x512xf32>
    %c24_100 = arith.constant 24 : index
    %c0_101 = arith.constant 0 : index
    %211 = vector.load %arg13[%c24_100, %c0_101] : memref<72x512xf32, #tpu.memory_space<vmem>>, vector<8x512xf32>
    tpu.vector_store %arg13[%c24_100, %c0_101], %210 {strides = array<i32>} : memref<72x512xf32, #tpu.memory_space<vmem>>, vector<8x512xf32>,
    %c32_102 = arith.constant 32 : index
    %c0_103 = arith.constant 0 : index
    %212 = vector.load %arg13[%c32_102, %c0_103] : memref<72x512xf32, #tpu.memory_space<vmem>>, vector<8x512xf32>
    tpu.vector_store %arg13[%c32_102, %c0_103], %185 {strides = array<i32>} : memref<72x512xf32, #tpu.memory_space<vmem>>, vector<8x512xf32>,
    %c510_i32_104 = arith.constant 510 : i32
    %213 = tpu.dynamic_rotate %185 by %c510_i32_104 dim 1 : vector<8x512xf32>, i32 -> vector<8x512xf32>
    %cst_105 = arith.constant 0.000000e+00 : f32
    %214 = vector.shape_cast %104 : vector<1x512xi1> to vector<1x512xi1>
    %215 = vector.broadcast %214 : vector<1x512xi1> to vector<8x512xi1>
    %216 = vector.broadcast %cst_105 : f32 to vector<8x512xf32>
    %217 = arith.select %215, %213, %216 : vector<8x512xi1>, vector<8x512xf32>
    %c40_106 = arith.constant 40 : index
    %c0_107 = arith.constant 0 : index
    %218 = vector.load %arg13[%c40_106, %c0_107] : memref<72x512xf32, #tpu.memory_space<vmem>>, vector<8x512xf32>
    tpu.vector_store %arg13[%c40_106, %c0_107], %217 {strides = array<i32>} : memref<72x512xf32, #tpu.memory_space<vmem>>, vector<8x512xf32>,
    %c482_i32_108 = arith.constant 482 : i32
    %219 = tpu.dynamic_rotate %185 by %c482_i32_108 dim 1 : vector<8x512xf32>, i32 -> vector<8x512xf32>
    %220 = arith.andi %100, %102 : vector<1x512xi1>
    %cst_109 = arith.constant 0.000000e+00 : f32
    %221 = vector.shape_cast %220 : vector<1x512xi1> to vector<1x512xi1>
    %222 = vector.broadcast %221 : vector<1x512xi1> to vector<8x512xi1>
    %223 = vector.broadcast %cst_109 : f32 to vector<8x512xf32>
    %224 = arith.select %222, %219, %223 : vector<8x512xi1>, vector<8x512xf32>
    %c48_110 = arith.constant 48 : index
    %c0_111 = arith.constant 0 : index
    %225 = vector.load %arg13[%c48_110, %c0_111] : memref<72x512xf32, #tpu.memory_space<vmem>>, vector<8x512xf32>
    tpu.vector_store %arg13[%c48_110, %c0_111], %224 {strides = array<i32>} : memref<72x512xf32, #tpu.memory_space<vmem>>, vector<8x512xf32>,
    %c480_i32_112 = arith.constant 480 : i32
    %226 = tpu.dynamic_rotate %185 by %c480_i32_112 dim 1 : vector<8x512xf32>, i32 -> vector<8x512xf32>
    %cst_113 = arith.constant 0.000000e+00 : f32
    %227 = vector.shape_cast %100 : vector<1x512xi1> to vector<1x512xi1>
    %228 = vector.broadcast %227 : vector<1x512xi1> to vector<8x512xi1>
    %229 = vector.broadcast %cst_113 : f32 to vector<8x512xf32>
    %230 = arith.select %228, %226, %229 : vector<8x512xi1>, vector<8x512xf32>
    %c56_114 = arith.constant 56 : index
    %c0_115 = arith.constant 0 : index
    %231 = vector.load %arg13[%c56_114, %c0_115] : memref<72x512xf32, #tpu.memory_space<vmem>>, vector<8x512xf32>
    tpu.vector_store %arg13[%c56_114, %c0_115], %230 {strides = array<i32>} : memref<72x512xf32, #tpu.memory_space<vmem>>, vector<8x512xf32>,
    %c478_i32_116 = arith.constant 478 : i32
    %232 = tpu.dynamic_rotate %185 by %c478_i32_116 dim 1 : vector<8x512xf32>, i32 -> vector<8x512xf32>
    %233 = arith.andi %100, %104 : vector<1x512xi1>
    %cst_117 = arith.constant 0.000000e+00 : f32
    %234 = vector.shape_cast %233 : vector<1x512xi1> to vector<1x512xi1>
    %235 = vector.broadcast %234 : vector<1x512xi1> to vector<8x512xi1>
    %236 = vector.broadcast %cst_117 : f32 to vector<8x512xf32>
    %237 = arith.select %235, %232, %236 : vector<8x512xi1>, vector<8x512xf32>
    %c64_118 = arith.constant 64 : index
    %c0_119 = arith.constant 0 : index
    %238 = vector.load %arg13[%c64_118, %c0_119] : memref<72x512xf32, #tpu.memory_space<vmem>>, vector<8x512xf32>
    tpu.vector_store %arg13[%c64_118, %c0_119], %237 {strides = array<i32>} : memref<72x512xf32, #tpu.memory_space<vmem>>, vector<8x512xf32>,
    %c0_120 = arith.constant 0 : index
    %c0_121 = arith.constant 0 : index
    %239 = vector.load %arg13[%c0_120, %c0_121] : memref<72x512xf32, #tpu.memory_space<vmem>>, vector<72x512xf32>
    %c0_122 = arith.constant 0 : index
    %c0_123 = arith.constant 0 : index
    %240 = vector.load %arg8[%c0_122, %c0_123] : memref<8x72xf32, #tpu.memory_space<vmem>>, vector<8x72xf32>
    %cst_124 = arith.constant dense<0.000000e+00> : vector<8x512xf32>
    %241 = tpu.matmul %240, %239, %cst_124 {dimension_numbers = #tpu.dot_dimension_numbers<[1], [0], [0], [1], [0, 0, 1, 1], [], []>} : vector<8x72xf32>, vector<72x512xf32>, vector<8x512xf32> -> vector<8x512xf32>
    %c0_125 = arith.constant 0 : index
    %c0_126 = arith.constant 0 : index
    %242 = vector.load %arg9[%c0_125, %c0_126] : memref<8x1xf32, #tpu.memory_space<vmem>>, vector<8x1xf32>
    %c0_127 = arith.constant 0 : index
    %c0_128 = arith.constant 0 : index
    %243 = vector.load %arg10[%c0_127, %c0_128] : memref<8x1xf32, #tpu.memory_space<vmem>>, vector<8x1xf32>
    %cst_129 = arith.constant dense<0.000000e+00> : vector<8xf32>
    %244 = vector.multi_reduction <add>, %241, %cst_129 [1] : vector<8x512xf32> to vector<8xf32>
    %245 = vector.shape_cast %244 : vector<8xf32> to vector<8x1xf32>
    %cst_130 = arith.constant 5.120000e+02 : f32
    %246 = vector.broadcast %cst_130 : f32 to vector<8x1xf32>
    %247 = arith.divf %245, %246 : vector<8x1xf32>
    %248 = arith.mulf %241, %241 : vector<8x512xf32>
    %cst_131 = arith.constant dense<0.000000e+00> : vector<8xf32>
    %249 = vector.multi_reduction <add>, %248, %cst_131 [1] : vector<8x512xf32> to vector<8xf32>
    %250 = vector.shape_cast %249 : vector<8xf32> to vector<8x1xf32>
    %cst_132 = arith.constant 5.120000e+02 : f32
    %251 = vector.broadcast %cst_132 : f32 to vector<8x1xf32>
    %252 = arith.divf %250, %251 : vector<8x1xf32>
    %253 = arith.mulf %247, %247 : vector<8x1xf32>
    %254 = arith.subf %252, %253 : vector<8x1xf32>
    %cst_133 = arith.constant 9.99999974E-6 : f32
    %255 = vector.broadcast %cst_133 : f32 to vector<8x1xf32>
    %256 = arith.addf %254, %255 : vector<8x1xf32>
    %257 = math.rsqrt %256 : vector<8x1xf32>
    %258 = arith.mulf %242, %257 : vector<8x1xf32>
    %259 = arith.mulf %247, %258 : vector<8x1xf32>
    %260 = arith.subf %243, %259 : vector<8x1xf32>
    %261 = vector.broadcast %258 : vector<8x1xf32> to vector<8x512xf32>
    %262 = arith.mulf %241, %261 : vector<8x512xf32>
    %263 = vector.broadcast %260 : vector<8x1xf32> to vector<8x512xf32>
    %264 = arith.addf %262, %263 : vector<8x512xf32>
    %265 = arith.addf %264, %96 : vector<8x512xf32>
    %cst_134 = arith.constant 0.000000e+00 : f32
    %266 = vector.broadcast %cst_134 : f32 to vector<8x512xf32>
    %267 = arith.maximumf %265, %266 : vector<8x512xf32>
    %c0_135 = arith.constant 0 : index
    %c0_136 = arith.constant 0 : index
    %268 = vector.load %arg12[%c0_135, %c0_136] : memref<8x512xf32, #tpu.memory_space<vmem>>, vector<8x512xf32>
    tpu.vector_store %arg12[%c0_135, %c0_136], %267 {strides = array<i32>} : memref<8x512xf32, #tpu.memory_space<vmem>>, vector<8x512xf32>,
    return
  }
}

</mosaic_0001>

<llo_original>
// kernel: rdb2_forward.1
$region0: #{rdb2_forward.1}
  #allocation0 [shape = 'u32[]', space=smem, size = 0x4, offset = 0x4, fixed_abs, tag = 'smem constant byte address 0x4 - core index']
  #allocation1 [shape = 'u32[144,128]{1,0:T(1,128)}', space=vmem, size = 0x12000, scoped, tag = 'internal scratch']
  #allocation2 [shape = 'f32[72,512]{1,0:T(8,128)}', space=vmem, size = 0x24000, scoped, tag = 'scratch operand']
  %s0 = inlined_call_operand.vmem [shape: f32[8,512], index: 0, kind: input, shape index: {}]
  %s1 = inlined_call_operand.vmem [shape: s32[2,512], index: 1, kind: input, shape index: {}]
  %s2 = inlined_call_operand.vmem [shape: f32[16,72], index: 2, kind: input, shape index: {}]
  %s3 = inlined_call_operand.vmem [shape: f32[8,1], index: 3, kind: input, shape index: {}]
  %s4 = inlined_call_operand.vmem [shape: f32[8,1], index: 4, kind: input, shape index: {}]
  %s5 = inlined_call_operand.vmem [shape: f32[8,72], index: 5, kind: input, shape index: {}]
  %s6 = inlined_call_operand.vmem [shape: f32[8,1], index: 6, kind: input, shape index: {}]
  %s7 = inlined_call_operand.vmem [shape: f32[8,1], index: 7, kind: input, shape index: {}]
  %s8 = inlined_call_operand.vmem [shape: f32[8,72], index: 8, kind: input, shape index: {}]
  %s9 = inlined_call_operand.vmem [shape: f32[8,1], index: 9, kind: input, shape index: {}]
  %s10 = inlined_call_operand.vmem [shape: f32[8,1], index: 10, kind: input, shape index: {}]
  %s11 = inlined_call_operand.vmem [shape: f32[8,1], index: 11, kind: input, shape index: {}]
  %s12 = inlined_call_operand.vmem [shape: f32[8,512], index: 12, kind: output, shape index: {}]
  %s13 = sld [smem:[#allocation0]]
  $region58: #{rdb2_forward.1} parent=0
    _
  %s15 = ssub.s32 1, %s13
  %s16 = scalar_select 0, %s15, %s13
  // Predicated region
  $region2: #{rdb2_forward.1} parent=0 // pred_check
    _
  $region3: #{rdb2_forward.1} parent=0 // pred_check_branch
    %18 = sbr.rel (0) target = $region5
  $region4: #{rdb2_forward.1} parent=0 // pred_region
    _
  $region5: #{rdb2_forward.1} parent=0 // pred_fallthru
    _
  // Predicated region
  $region6: #{rdb2_forward.1} parent=0 // pred_check
    _
  $region7: #{rdb2_forward.1} parent=0 // pred_check_branch
    %20 = sbr.rel (0) target = $region9
  $region8: #{rdb2_forward.1} parent=0 // pred_region
    _
  $region9: #{rdb2_forward.1} parent=0 // pred_fallthru
    _
  // Predicated region
  $region10: #{rdb2_forward.1} parent=0 // pred_check
    _
  $region11: #{rdb2_forward.1} parent=0 // pred_check_branch
    %22 = sbr.rel (0) target = $region13
  $region12: #{rdb2_forward.1} parent=0 // pred_region
    _
  $region13: #{rdb2_forward.1} parent=0 // pred_fallthru
    _
  // Predicated region
  $region14: #{rdb2_forward.1} parent=0 // pred_check
    _
  $region15: #{rdb2_forward.1} parent=0 // pred_check_branch
    %24 = sbr.rel (0) target = $region17
  $region16: #{rdb2_forward.1} parent=0 // pred_region
    _
  $region17: #{rdb2_forward.1} parent=0 // pred_fallthru
    _
  // Predicated region
  $region18: #{rdb2_forward.1} parent=0 // pred_check
    _
  $region19: #{rdb2_forward.1} parent=0 // pred_check_branch
    %26 = sbr.rel (0) target = $region21
  $region20: #{rdb2_forward.1} parent=0 // pred_region
    _
  $region21: #{rdb2_forward.1} parent=0 // pred_fallthru
    _
  // Predicated region
  $region22: #{rdb2_forward.1} parent=0 // pred_check
    _
  $region23: #{rdb2_forward.1} parent=0 // pred_check_branch
    %28 = sbr.rel (0) target = $region25
  $region24: #{rdb2_forward.1} parent=0 // pred_region
    _
  $region25: #{rdb2_forward.1} parent=0 // pred_fallthru
    _
  // Predicated region
  $region26: #{rdb2_forward.1} parent=0 // pred_check
    _
  $region27: #{rdb2_forward.1} parent=0 // pred_check_branch
    %30 = sbr.rel (0) target = $region29
  $region28: #{rdb2_forward.1} parent=0 // pred_region
    _
  $region29: #{rdb2_forward.1} parent=0 // pred_fallthru
    _
  // Predicated region
  $region30: #{rdb2_forward.1} parent=0 // pred_check
    _
  $region31: #{rdb2_forward.1} parent=0 // pred_check_branch
    %32 = sbr.rel (0) target = $region33
  $region32: #{rdb2_forward.1} parent=0 // pred_region
    _
  $region33: #{rdb2_forward.1} parent=0 // pred_fallthru
    _
  // Predicated region
  $region34: #{rdb2_forward.1} parent=0 // pred_check
    _
  $region35: #{rdb2_forward.1} parent=0 // pred_check_branch
    %34 = sbr.rel (0) target = $region37
  $region36: #{rdb2_forward.1} parent=0 // pred_region
    _
  $region37: #{rdb2_forward.1} parent=0 // pred_fallthru
    _
  // Predicated region
  $region38: #{rdb2_forward.1} parent=0 // pred_check
    _
  $region39: #{rdb2_forward.1} parent=0 // pred_check_branch
    %36 = sbr.rel (0) target = $region41
  $region40: #{rdb2_forward.1} parent=0 // pred_region
    _
  $region41: #{rdb2_forward.1} parent=0 // pred_fallthru
    _
  // Predicated region
  $region42: #{rdb2_forward.1} parent=0 // pred_check
    _
  $region43: #{rdb2_forward.1} parent=0 // pred_check_branch
    %38 = sbr.rel (0) target = $region45
  $region44: #{rdb2_forward.1} parent=0 // pred_region
    _
  $region45: #{rdb2_forward.1} parent=0 // pred_fallthru
    _
  // Predicated region
  $region46: #{rdb2_forward.1} parent=0 // pred_check
    _
  $region47: #{rdb2_forward.1} parent=0 // pred_check_branch
    %40 = sbr.rel (0) target = $region49
  $region48: #{rdb2_forward.1} parent=0 // pred_region
    _
  $region49: #{rdb2_forward.1} parent=0 // pred_fallthru
    _
  %v41 = vld [vmem:[%s0] sm:$0xff]
  %v42 = vld [vmem:[%s0 + $0x8] sm:$0xff]
  %v43 = vld [vmem:[%s0 + $0x10] sm:$0xff]
  %v44 = vld [vmem:[%s0 + $0x18] sm:$0xff]
  %v45 = vld [vmem:[%s1] ss:$2 sm:$0xf]
  %s46 = scalar_lea.vmem %s1, 1
  %v47 = vld [vmem:[%s46] ss:$2 sm:$0xf]
  %vm48 = vcmp.ge.s32.totalorder %v45, 1
  %vm49 = vcmp.lt.s32.totalorder %v45, 15
  %vm50 = vcmp.ge.s32.totalorder %v47, 1
  %vm51 = vcmp.lt.s32.totalorder %v47, 15
  %52 = vrot.lane.b32.xlu0 %v41, 17
  %v53 = vpop.permute.xlu0 %52
  %54 = vrot.lane.b32.xlu0 %v42, 17
  %v55 = vpop.permute.xlu0 %54
  %56 = vrot.lane.b32.xlu0 %v43, 17
  %v57 = vpop.permute.xlu0 %56
  %58 = vrot.lane.b32.xlu0 %v44, 17
  %v59 = vpop.permute.xlu0 %58
  %v60 = vlaneseq
  %v61 = vand.u32 %v60, 127
  %vm62 = vcmp.lt.s32.totalorder %v61, 17
  %v63 = vsel %vm62, %v57, %v59
  %v64 = vsel %vm62, %v55, %v57
  %v65 = vsel %vm62, %v53, %v55
  %v66 = vsel %vm62, %v59, %v53
  %vm67 = vmand %vm48, %vm50
  %v68 = vsel %vm67, 1, 0
  %v69 = vlaneseq
  %v70 = vshrl.u32 %v69, 7
  %v71 = vsub.s32 0, %v70
  %v72 = vrot.slane %v68, %v71
  %v73 = vlaneseq
  %v74 = vshrl.u32 %v73, 7
  %v75 = vsub.s32 1, %v74
  %v76 = vrot.slane %v68, %v75
  %v77 = vlaneseq
  %v78 = vshrl.u32 %v77, 7
  %v79 = vsub.s32 2, %v78
  %v80 = vrot.slane %v68, %v79
  %v81 = vlaneseq
  %v82 = vshrl.u32 %v81, 7
  %v83 = vsub.s32 3, %v82
  %v84 = vrot.slane %v68, %v83
  %vm85 = vcmp.eq.s32.totalorder %v72, 1
  %vm86 = vcmp.eq.s32.totalorder %v76, 1
  %vm87 = vcmp.eq.s32.totalorder %v80, 1
  %vm88 = vcmp.eq.s32.totalorder %v84, 1
  %v89 = vsel %vm85, %v66, 0.0
  %v90 = vsel %vm86, %v65, 0.0
  %v91 = vsel %vm87, %v64, 0.0
  %v92 = vsel %vm88, %v63, 0.0
  %93 = vst [vmem:[#allocation2] sm:$0xff] %v89
  %94 = vst [vmem:[#allocation2 + $0x8] sm:$0xff] %v90
  %95 = vst [vmem:[#allocation2 + $0x10] sm:$0xff] %v91
  %96 = vst [vmem:[#allocation2 + $0x18] sm:$0xff] %v92
  %97 = vrot.lane.b32.xlu0 %v41, 16
  %v98 = vpop.permute.xlu0 %97
  %99 = vrot.lane.b32.xlu0 %v42, 16
  %v100 = vpop.permute.xlu0 %99
  %101 = vrot.lane.b32.xlu0 %v43, 16
  %v102 = vpop.permute.xlu0 %101
  %103 = vrot.lane.b32.xlu0 %v44, 16
  %v104 = vpop.permute.xlu0 %103
  %vm105 = vcmp.lt.s32.totalorder %v61, 16
  %v106 = vsel %vm105, %v102, %v104
  %v107 = vsel %vm105, %v100, %v102
  %v108 = vsel %vm105, %v98, %v100
  %v109 = vsel %vm105, %v104, %v98
  %v110 = vsel %vm48, 1, 0
  %v111 = vlaneseq
  %v112 = vshrl.u32 %v111, 7
  %v113 = vsub.s32 0, %v112
  %v114 = vrot.slane %v110, %v113
  %v115 = vlaneseq
  %v116 = vshrl.u32 %v115, 7
  %v117 = vsub.s32 1, %v116
  %v118 = vrot.slane %v110, %v117
  %v119 = vlaneseq
  %v120 = vshrl.u32 %v119, 7
  %v121 = vsub.s32 2, %v120
  %v122 = vrot.slane %v110, %v121
  %v123 = vlaneseq
  %v124 = vshrl.u32 %v123, 7
  %v125 = vsub.s32 3, %v124
  %v126 = vrot.slane %v110, %v125
  %vm127 = vcmp.eq.s32.totalorder %v114, 1
  %vm128 = vcmp.eq.s32.totalorder %v118, 1
  %vm129 = vcmp.eq.s32.totalorder %v122, 1
  %vm130 = vcmp.eq.s32.totalorder %v126, 1
  %v131 = vsel %vm127, %v109, 0.0
  %v132 = vsel %vm128, %v108, 0.0
  %v133 = vsel %vm129, %v107, 0.0
  %v134 = vsel %vm130, %v106, 0.0
  %135 = vst [vmem:[#allocation2 + $0x20] sm:$0xff] %v131
  %136 = vst [vmem:[#allocation2 + $0x28] sm:$0xff] %v132
  %137 = vst [vmem:[#allocation2 + $0x30] sm:$0xff] %v133
  %138 = vst [vmem:[#allocation2 + $0x38] sm:$0xff] %v134
  %139 = vrot.lane.b32.xlu0 %v41, 15
  %v140 = vpop.permute.xlu0 %139
  %141 = vrot.lane.b32.xlu0 %v42, 15
  %v142 = vpop.permute.xlu0 %141
  %143 = vrot.lane.b32.xlu0 %v43, 15
  %v144 = vpop.permute.xlu0 %143
  %145 = vrot.lane.b32.xlu0 %v44, 15
  %v146 = vpop.permute.xlu0 %145
  %vm147 = vcmp.lt.s32.totalorder %v61, 15
  %v148 = vsel %vm147, %v144, %v146
  %v149 = vsel %vm147, %v142, %v144
  %v150 = vsel %vm147, %v140, %v142
  %v151 = vsel %vm147, %v146, %v140
  %vm152 = vmand %vm48, %vm51
  %v153 = vsel %vm152, 1, 0
  %v154 = vlaneseq
  %v155 = vshrl.u32 %v154, 7
  %v156 = vsub.s32 0, %v155
  %v157 = vrot.slane %v153, %v156
  %v158 = vlaneseq
  %v159 = vshrl.u32 %v158, 7
  %v160 = vsub.s32 1, %v159
  %v161 = vrot.slane %v153, %v160
  %v162 = vlaneseq
  %v163 = vshrl.u32 %v162, 7
  %v164 = vsub.s32 2, %v163
  %v165 = vrot.slane %v153, %v164
  %v166 = vlaneseq
  %v167 = vshrl.u32 %v166, 7
  %v168 = vsub.s32 3, %v167
  %v169 = vrot.slane %v153, %v168
  %vm170 = vcmp.eq.s32.totalorder %v157, 1
  %vm171 = vcmp.eq.s32.totalorder %v161, 1
  %vm172 = vcmp.eq.s32.totalorder %v165, 1
  %vm173 = vcmp.eq.s32.totalorder %v169, 1
  %v174 = vsel %vm170, %v151, 0.0
  %v175 = vsel %vm171, %v150, 0.0
  %v176 = vsel %vm172, %v149, 0.0
  %v177 = vsel %vm173, %v148, 0.0
  %178 = vst [vmem:[#allocation2 + $0x40] sm:$0xff] %v174
  %179 = vst [vmem:[#allocation2 + $0x48] sm:$0xff] %v175
  %180 = vst [vmem:[#allocation2 + $0x50] sm:$0xff] %v176
  %181 = vst [vmem:[#allocation2 + $0x58] sm:$0xff] %v177
  %182 = vrot.lane.b32.xlu0 %v41, 1
  %v183 = vpop.permute.xlu0 %182
  %184 = vrot.lane.b32.xlu0 %v42, 1
  %v185 = vpop.permute.xlu0 %184
  %186 = vrot.lane.b32.xlu0 %v43, 1
  %v187 = vpop.permute.xlu0 %186
  %188 = vrot.lane.b32.xlu0 %v44, 1
  %v189 = vpop.permute.xlu0 %188
  %vm190 = vcmp.lt.s32.totalorder %v61, 1
  %v191 = vsel %vm190, %v187, %v189
  %v192 = vsel %vm190, %v185, %v187
  %v193 = vsel %vm190, %v183, %v185
  %v194 = vsel %vm190, %v189, %v183
  %v195 = vsel %vm50, 1, 0
  %v196 = vlaneseq
  %v197 = vshrl.u32 %v196, 7
  %v198 = vsub.s32 0, %v197
  %v199 = vrot.slane %v195, %v198
  %v200 = vlaneseq
  %v201 = vshrl.u32 %v200, 7
  %v202 = vsub.s32 1, %v201
  %v203 = vrot.slane %v195, %v202
  %v204 = vlaneseq
  %v205 = vshrl.u32 %v204, 7
  %v206 = vsub.s32 2, %v205
  %v207 = vrot.slane %v195, %v206
  %v208 = vlaneseq
  %v209 = vshrl.u32 %v208, 7
  %v210 = vsub.s32 3, %v209
  %v211 = vrot.slane %v195, %v210
  %vm212 = vcmp.eq.s32.totalorder %v199, 1
  %vm213 = vcmp.eq.s32.totalorder %v203, 1
  %vm214 = vcmp.eq.s32.totalorder %v207, 1
  %vm215 = vcmp.eq.s32.totalorder %v211, 1
  %v216 = vsel %vm212, %v194, 0.0
  %v217 = vsel %vm213, %v193, 0.0
  %v218 = vsel %vm214, %v192, 0.0
  %v219 = vsel %vm215, %v191, 0.0
  %220 = vst [vmem:[#allocation2 + $0x60] sm:$0xff] %v216
  %221 = vst [vmem:[#allocation2 + $0x68] sm:$0xff] %v217
  %222 = vst [vmem:[#allocation2 + $0x70] sm:$0xff] %v218
  %223 = vst [vmem:[#allocation2 + $0x78] sm:$0xff] %v219
  %224 = vst [vmem:[#allocation2 + $0x80] sm:$0xff] %v41
  %225 = vst [vmem:[#allocation2 + $0x88] sm:$0xff] %v42
  %226 = vst [vmem:[#allocation2 + $0x90] sm:$0xff] %v43
  %227 = vst [vmem:[#allocation2 + $0x98] sm:$0xff] %v44
  %228 = vrot.lane.b32.xlu0 %v41, 127
  %v229 = vpop.permute.xlu0 %228
  %230 = vrot.lane.b32.xlu0 %v42, 127
  %v231 = vpop.permute.xlu0 %230
  %232 = vrot.lane.b32.xlu0 %v43, 127
  %v233 = vpop.permute.xlu0 %232
  %234 = vrot.lane.b32.xlu0 %v44, 127
  %v235 = vpop.permute.xlu0 %234
  %vm236 = vcmp.lt.s32.totalorder %v61, 127
  %v237 = vsel %vm236, %v233, %v235
  %v238 = vsel %vm236, %v231, %v233
  %v239 = vsel %vm236, %v229, %v231
  %v240 = vsel %vm236, %v235, %v229
  %v241 = vsel %vm51, 1, 0
  %v242 = vlaneseq
  %v243 = vshrl.u32 %v242, 7
  %v244 = vsub.s32 0, %v243
  %v245 = vrot.slane %v241, %v244
  %v246 = vlaneseq
  %v247 = vshrl.u32 %v246, 7
  %v248 = vsub.s32 1, %v247
  %v249 = vrot.slane %v241, %v248
  %v250 = vlaneseq
  %v251 = vshrl.u32 %v250, 7
  %v252 = vsub.s32 2, %v251
  %v253 = vrot.slane %v241, %v252
  %v254 = vlaneseq
  %v255 = vshrl.u32 %v254, 7
  %v256 = vsub.s32 3, %v255
  %v257 = vrot.slane %v241, %v256
  %vm258 = vcmp.eq.s32.totalorder %v245, 1
  %vm259 = vcmp.eq.s32.totalorder %v249, 1
  %vm260 = vcmp.eq.s32.totalorder %v253, 1
  %vm261 = vcmp.eq.s32.totalorder %v257, 1
  %v262 = vsel %vm258, %v239, 0.0
  %v263 = vsel %vm259, %v238, 0.0
  %v264 = vsel %vm260, %v237, 0.0
  %v265 = vsel %vm261, %v240, 0.0
  %266 = vst [vmem:[#allocation2 + $0xa0] sm:$0xff] %v262
  %267 = vst [vmem:[#allocation2 + $0xa8] sm:$0xff] %v263
  %268 = vst [vmem:[#allocation2 + $0xb0] sm:$0xff] %v264
  %269 = vst [vmem:[#allocation2 + $0xb8] sm:$0xff] %v265
  %270 = vrot.lane.b32.xlu0 %v41, 113
  %v271 = vpop.permute.xlu0 %270
  %272 = vrot.lane.b32.xlu0 %v42, 113
  %v273 = vpop.permute.xlu0 %272
  %274 = vrot.lane.b32.xlu0 %v43, 113
  %v275 = vpop.permute.xlu0 %274
  %276 = vrot.lane.b32.xlu0 %v44, 113
  %v277 = vpop.permute.xlu0 %276
  %vm278 = vcmp.lt.s32.totalorder %v61, 113
  %v279 = vsel %vm278, %v275, %v277
  %v280 = vsel %vm278, %v273, %v275
  %v281 = vsel %vm278, %v271, %v273
  %v282 = vsel %vm278, %v277, %v271
  %vm283 = vmand %vm49, %vm50
  %v284 = vsel %vm283, 1, 0
  %v285 = vlaneseq
  %v286 = vshrl.u32 %v285, 7
  %v287 = vsub.s32 0, %v286
  %v288 = vrot.slane %v284, %v287
  %v289 = vlaneseq
  %v290 = vshrl.u32 %v289, 7
  %v291 = vsub.s32 1, %v290
  %v292 = vrot.slane %v284, %v291
  %v293 = vlaneseq
  %v294 = vshrl.u32 %v293, 7
  %v295 = vsub.s32 2, %v294
  %v296 = vrot.slane %v284, %v295
  %v297 = vlaneseq
  %v298 = vshrl.u32 %v297, 7
  %v299 = vsub.s32 3, %v298
  %v300 = vrot.slane %v284, %v299
  %vm301 = vcmp.eq.s32.totalorder %v288, 1
  %vm302 = vcmp.eq.s32.totalorder %v292, 1
  %vm303 = vcmp.eq.s32.totalorder %v296, 1
  %vm304 = vcmp.eq.s32.totalorder %v300, 1
  %v305 = vsel %vm301, %v281, 0.0
  %v306 = vsel %vm302, %v280, 0.0
  %v307 = vsel %vm303, %v279, 0.0
  %v308 = vsel %vm304, %v282, 0.0
  %309 = vst [vmem:[#allocation2 + $0xc0] sm:$0xff] %v305
  %310 = vst [vmem:[#allocation2 + $0xc8] sm:$0xff] %v306
  %311 = vst [vmem:[#allocation2 + $0xd0] sm:$0xff] %v307
  %312 = vst [vmem:[#allocation2 + $0xd8] sm:$0xff] %v308
  %313 = vrot.lane.b32.xlu0 %v41, 112
  %v314 = vpop.permute.xlu0 %313
  %315 = vrot.lane.b32.xlu0 %v42, 112
  %v316 = vpop.permute.xlu0 %315
  %317 = vrot.lane.b32.xlu0 %v43, 112
  %v318 = vpop.permute.xlu0 %317
  %319 = vrot.lane.b32.xlu0 %v44, 112
  %v320 = vpop.permute.xlu0 %319
  %vm321 = vcmp.lt.s32.totalorder %v61, 112
  %v322 = vsel %vm321, %v318, %v320
  %v323 = vsel %vm321, %v316, %v318
  %v324 = vsel %vm321, %v314, %v316
  %v325 = vsel %vm321, %v320, %v314
  %v326 = vsel %vm49, 1, 0
  %v327 = vlaneseq
  %v328 = vshrl.u32 %v327, 7
  %v329 = vsub.s32 0, %v328
  %v330 = vrot.slane %v326, %v329
  %v331 = vlaneseq
  %v332 = vshrl.u32 %v331, 7
  %v333 = vsub.s32 1, %v332
  %v334 = vrot.slane %v326, %v333
  %v335 = vlaneseq
  %v336 = vshrl.u32 %v335, 7
  %v337 = vsub.s32 2, %v336
  %v338 = vrot.slane %v326, %v337
  %v339 = vlaneseq
  %v340 = vshrl.u32 %v339, 7
  %v341 = vsub.s32 3, %v340
  %v342 = vrot.slane %v326, %v341
  %vm343 = vcmp.eq.s32.totalorder %v330, 1
  %vm344 = vcmp.eq.s32.totalorder %v334, 1
  %vm345 = vcmp.eq.s32.totalorder %v338, 1
  %vm346 = vcmp.eq.s32.totalorder %v342, 1
  %v347 = vsel %vm343, %v324, 0.0
  %v348 = vsel %vm344, %v323, 0.0
  %v349 = vsel %vm345, %v322, 0.0
  %v350 = vsel %vm346, %v325, 0.0
  %351 = vst [vmem:[#allocation2 + $0xe0] sm:$0xff] %v347
  %352 = vst [vmem:[#allocation2 + $0xe8] sm:$0xff] %v348
  %353 = vst [vmem:[#allocation2 + $0xf0] sm:$0xff] %v349
  %354 = vst [vmem:[#allocation2 + $0xf8] sm:$0xff] %v350
  %355 = vrot.lane.b32.xlu0 %v41, 111
  %v356 = vpop.permute.xlu0 %355
  %357 = vrot.lane.b32.xlu0 %v42, 111
  %v358 = vpop.permute.xlu0 %357
  %359 = vrot.lane.b32.xlu0 %v43, 111
  %v360 = vpop.permute.xlu0 %359
  %361 = vrot.lane.b32.xlu0 %v44, 111
  %v362 = vpop.permute.xlu0 %361
  %vm363 = vcmp.lt.s32.totalorder %v61, 111
  %v364 = vsel %vm363, %v360, %v362
  %v365 = vsel %vm363, %v358, %v360
  %v366 = vsel %vm363, %v356, %v358
  %v367 = vsel %vm363, %v362, %v356
  %vm368 = vmand %vm49, %vm51
  %v369 = vsel %vm368, 1, 0
  %v370 = vlaneseq
  %v371 = vshrl.u32 %v370, 7
  %v372 = vsub.s32 0, %v371
  %v373 = vrot.slane %v369, %v372
  %v374 = vlaneseq
  %v375 = vshrl.u32 %v374, 7
  %v376 = vsub.s32 1, %v375
  %v377 = vrot.slane %v369, %v376
  %v378 = vlaneseq
  %v379 = vshrl.u32 %v378, 7
  %v380 = vsub.s32 2, %v379
  %v381 = vrot.slane %v369, %v380
  %v382 = vlaneseq
  %v383 = vshrl.u32 %v382, 7
  %v384 = vsub.s32 3, %v383
  %v385 = vrot.slane %v369, %v384
  %vm386 = vcmp.eq.s32.totalorder %v373, 1
  %vm387 = vcmp.eq.s32.totalorder %v377, 1
  %vm388 = vcmp.eq.s32.totalorder %v381, 1
  %vm389 = vcmp.eq.s32.totalorder %v385, 1
  %v390 = vsel %vm386, %v366, 0.0
  %v391 = vsel %vm387, %v365, 0.0
  %v392 = vsel %vm388, %v364, 0.0
  %v393 = vsel %vm389, %v367, 0.0
  %394 = vst [vmem:[#allocation2 + $0x100] sm:$0xff] %v390
  %395 = vst [vmem:[#allocation2 + $0x108] sm:$0xff] %v391
  %396 = vst [vmem:[#allocation2 + $0x110] sm:$0xff] %v392
  %397 = vst [vmem:[#allocation2 + $0x118] sm:$0xff] %v393
  %v398 = vld [vmem:[#allocation2] sm:$0xff]
  %v399 = vld [vmem:[#allocation2 + $0x8] sm:$0xff]
  %v400 = vld [vmem:[#allocation2 + $0x10] sm:$0xff]
  %v401 = vld [vmem:[#allocation2 + $0x18] sm:$0xff]
  %v402 = vld [vmem:[#allocation2 + $0x20] sm:$0xff]
  %v403 = vld [vmem:[#allocation2 + $0x28] sm:$0xff]
  %v404 = vld [vmem:[#allocation2 + $0x30] sm:$0xff]
  %v405 = vld [vmem:[#allocation2 + $0x38] sm:$0xff]
  %v406 = vld [vmem:[#allocation2 + $0x40] sm:$0xff]
  %v407 = vld [vmem:[#allocation2 + $0x48] sm:$0xff]
  %v408 = vld [vmem:[#allocation2 + $0x50] sm:$0xff]
  %v409 = vld [vmem:[#allocation2 + $0x58] sm:$0xff]
  %v410 = vld [vmem:[#allocation2 + $0x60] sm:$0xff]
  %v411 = vld [vmem:[#allocation2 + $0x68] sm:$0xff]
  %v412 = vld [vmem:[#allocation2 + $0x70] sm:$0xff]
  %v413 = vld [vmem:[#allocation2 + $0x78] sm:$0xff]
  %v414 = vld [vmem:[#allocation2 + $0x80] sm:$0xff]
  %v415 = vld [vmem:[#allocation2 + $0x88] sm:$0xff]
  %v416 = vld [vmem:[#allocation2 + $0x90] sm:$0xff]
  %v417 = vld [vmem:[#allocation2 + $0x98] sm:$0xff]
  %v418 = vld [vmem:[#allocation2 + $0xa0] sm:$0xff]
  %v419 = vld [vmem:[#allocation2 + $0xa8] sm:$0xff]
  %v420 = vld [vmem:[#allocation2 + $0xb0] sm:$0xff]
  %v421 = vld [vmem:[#allocation2 + $0xb8] sm:$0xff]
  %v422 = vld [vmem:[#allocation2 + $0xc0] sm:$0xff]
  %v423 = vld [vmem:[#allocation2 + $0xc8] sm:$0xff]
  %v424 = vld [vmem:[#allocation2 + $0xd0] sm:$0xff]
  %v425 = vld [vmem:[#allocation2 + $0xd8] sm:$0xff]
  %v426 = vld [vmem:[#allocation2 + $0xe0] sm:$0xff]
  %v427 = vld [vmem:[#allocation2 + $0xe8] sm:$0xff]
  %v428 = vld [vmem:[#allocation2 + $0xf0] sm:$0xff]
  %v429 = vld [vmem:[#allocation2 + $0xf8] sm:$0xff]
  %v430 = vld [vmem:[#allocation2 + $0x100] sm:$0xff]
  %v431 = vld [vmem:[#allocation2 + $0x108] sm:$0xff]
  %v432 = vld [vmem:[#allocation2 + $0x110] sm:$0xff]
  %v433 = vld [vmem:[#allocation2 + $0x118] sm:$0xff]
  %v434 = vld [vmem:[%s2] sm:$0xff]
  %v435 = vld [vmem:[%s2 + $0x8] sm:$0xff]
  %vm436 = vcmask 588800
  %v438 = vsel %vm436, %v434, 0
  %v441 = vsel %vm436, %v435, 0
  %443 = vmatprep.subr.mxu0 %v399
  %444 = vmatpush1.msra.mxu0 %v398
  %445 = vmatprep.subr.mxu0 %v403
  %446 = vmatpush1.msra.mxu0 %v402
  %447 = vmatprep.subr.mxu0 %v407
  %448 = vmatpush1.msra.mxu0 %v406
  %449 = vmatprep.subr.mxu0 %v411
  %450 = vmatpush1.msra.mxu0 %v410
  %451 = vmatprep.subr.mxu0 %v415
  %452 = vmatpush1.msra.mxu0 %v414
  %453 = vmatprep.subr.mxu0 %v419
  %454 = vmatpush1.msra.mxu0 %v418
  %455 = vmatprep.subr.mxu0 %v423
  %456 = vmatpush1.msra.mxu0 %v422
  %457 = vmatprep.subr.mxu0 %v427
  %458 = vmatpush1.msra.mxu0 %v426
  %459 = vmatprep.subr.mxu0 %v431
  %460 = vmatpush1.msra.mxu0 %v430
  %461 = vmatprep.subr.mxu0 0.0
  %462 = vmatpush1.msra.mxu0 0.0
  %463 = vmatprep.subr.mxu0 0.0
  %464 = vmatpush1.msra.mxu0 0.0
  %465 = vmatprep.subr.mxu0 0.0
  %466 = vmatpush1.msra.mxu0 0.0
  %467 = vmatprep.subr.mxu0 0.0
  %468 = vmatpush1.msra.mxu0 0.0
  %469 = vmatprep.subr.mxu0 0.0
  %470 = vmatpush1.msra.mxu0 0.0
  %471 = vmatprep.subr.mxu0 0.0
  %472 = vmatpush1.msra.mxu0 0.0
  %473 = vmatprep.subr.mxu0 0.0
  %474 = vmatpush1.msra.mxu0 0.0
  %475 = vmatprep.subr.mxu0 0.0
  %476 = vmatpush1.msra.mxu0 0.0
  %477 = vmatprep.subr.mxu0 0.0
  %478 = vmatpush1.msra.mxu0 0.0
  %479 = vmatprep.subr.mxu0 0.0
  %480 = vmatpush1.msra.mxu0 0.0
  %481 = vmatprep.subr.mxu0 0.0
  %482 = vmatpush1.msra.mxu0 0.0
  %483 = vmatprep.subr.mxu0 0.0
  %484 = vmatpush1.msra.mxu0 0.0
  %485 = vmatprep.subr.mxu0 0.0
  %486 = vmatpush1.msra.mxu0 0.0
  %487 = vmatprep.subr.mxu0 0.0
  %488 = vmatpush1.msra.mxu0 0.0
  %489 = vmatprep.subr.mxu0 0.0
  %490 = vmatpush1.msra.mxu0 0.0
  %491 = vmatprep.subr.mxu0 0.0
  %492 = vmatpush1.msra.mxu0 0.0
  %493 = vmatprep.subr.mxu0 0.0
  %494 = vmatpush1.msra.mxu0 0.0
  %495 = vmatprep.subr.mxu0 0.0
  %496 = vmatpush1.msra.mxu0 0.0
  %497 = vmatprep.subr.mxu0 0.0
  %498 = vmatpush1.msra.mxu0 0.0
  %499 = vmatprep.subr.mxu0 0.0
  %500 = vmatpush1.msra.mxu0 0.0
  %501 = vmatprep.subr.mxu0 0.0
  %502 = vmatpush1.msra.mxu0 0.0
  %503 = vmatprep.subr.mxu0 0.0
  %504 = vmatpush1.msra.mxu0 0.0
  %505 = vmatprep.subr.mxu0 0.0
  %506 = vmatpush1.msra.mxu0 0.0
  %507 = vmatprep.mubr.f32.mxu0 0.0
  %508 = vmatmul.mubr.f32.gmra.mrb[0].mxu0 %v438
  %v509 = vpop.f32.mrb[0].mxu0
  %v510 = vadd.f32 0.0, %v509
  %v511 = vpop.f32.mrb[0].mxu0
  %v512 = vadd.f32 0.0, %v511
  %513 = vmatprep.mubr.f32.mxu0 0.0
  %514 = vmatmul.mubr.f32.gmra.mrb[0].mxu0 %v441
  %v515 = vpop.f32.mrb[0].mxu0
  %v516 = vadd.f32 0.0, %v515
  %v517 = vpop.f32.mrb[0].mxu0
  %v518 = vadd.f32 0.0, %v517
  %519 = vdwg.mxu0
  %520 = vmatprep.subr.mxu0 %v401
  %521 = vmatpush1.msra.mxu0 %v400
  %522 = vmatprep.subr.mxu0 %v405
  %523 = vmatpush1.msra.mxu0 %v404
  %524 = vmatprep.subr.mxu0 %v409
  %525 = vmatpush1.msra.mxu0 %v408
  %526 = vmatprep.subr.mxu0 %v413
  %527 = vmatpush1.msra.mxu0 %v412
  %528 = vmatprep.subr.mxu0 %v417
  %529 = vmatpush1.msra.mxu0 %v416
  %530 = vmatprep.subr.mxu0 %v421
  %531 = vmatpush1.msra.mxu0 %v420
  %532 = vmatprep.subr.mxu0 %v425
  %533 = vmatpush1.msra.mxu0 %v424
  %534 = vmatprep.subr.mxu0 %v429
  %535 = vmatpush1.msra.mxu0 %v428
  %536 = vmatprep.subr.mxu0 %v433
  %537 = vmatpush1.msra.mxu0 %v432
  %538 = vmatprep.subr.mxu0 0.0
  %539 = vmatpush1.msra.mxu0 0.0
  %540 = vmatprep.subr.mxu0 0.0
  %541 = vmatpush1.msra.mxu0 0.0
  %542 = vmatprep.subr.mxu0 0.0
  %543 = vmatpush1.msra.mxu0 0.0
  %544 = vmatprep.subr.mxu0 0.0
  %545 = vmatpush1.msra.mxu0 0.0
  %546 = vmatprep.subr.mxu0 0.0
  %547 = vmatpush1.msra.mxu0 0.0
  %548 = vmatprep.subr.mxu0 0.0
  %549 = vmatpush1.msra.mxu0 0.0
  %550 = vmatprep.subr.mxu0 0.0
  %551 = vmatpush1.msra.mxu0 0.0
  %552 = vmatprep.subr.mxu0 0.0
  %553 = vmatpush1.msra.mxu0 0.0
  %554 = vmatprep.subr.mxu0 0.0
  %555 = vmatpush1.msra.mxu0 0.0
  %556 = vmatprep.subr.mxu0 0.0
  %557 = vmatpush1.msra.mxu0 0.0
  %558 = vmatprep.subr.mxu0 0.0
  %559 = vmatpush1.msra.mxu0 0.0
  %560 = vmatprep.subr.mxu0 0.0
  %561 = vmatpush1.msra.mxu0 0.0
  %562 = vmatprep.subr.mxu0 0.0
  %563 = vmatpush1.msra.mxu0 0.0
  %564 = vmatprep.subr.mxu0 0.0
  %565 = vmatpush1.msra.mxu0 0.0
  %566 = vmatprep.subr.mxu0 0.0
  %567 = vmatpush1.msra.mxu0 0.0
  %568 = vmatprep.subr.mxu0 0.0
  %569 = vmatpush1.msra.mxu0 0.0
  %570 = vmatprep.subr.mxu0 0.0
  %571 = vmatpush1.msra.mxu0 0.0
  %572 = vmatprep.subr.mxu0 0.0
  %573 = vmatpush1.msra.mxu0 0.0
  %574 = vmatprep.subr.mxu0 0.0
  %575 = vmatpush1.msra.mxu0 0.0
  %576 = vmatprep.subr.mxu0 0.0
  %577 = vmatpush1.msra.mxu0 0.0
  %578 = vmatprep.subr.mxu0 0.0
  %579 = vmatpush1.msra.mxu0 0.0
  %580 = vmatprep.subr.mxu0 0.0
  %581 = vmatpush1.msra.mxu0 0.0
  %582 = vmatprep.subr.mxu0 0.0
  %583 = vmatpush1.msra.mxu0 0.0
  %584 = vmatprep.mubr.f32.mxu0 0.0
  %585 = vmatmul.mubr.f32.gmra.mrb[0].mxu0 %v438
  %v586 = vpop.f32.mrb[0].mxu0
  %v587 = vadd.f32 0.0, %v586
  %v588 = vpop.f32.mrb[0].mxu0
  %v589 = vadd.f32 0.0, %v588
  %590 = vmatprep.mubr.f32.mxu0 0.0
  %591 = vmatmul.mubr.f32.gmra.mrb[0].mxu0 %v441
  %v592 = vpop.f32.mrb[0].mxu0
  %v593 = vadd.f32 0.0, %v592
  %v594 = vpop.f32.mrb[0].mxu0
  %v595 = vadd.f32 0.0, %v594
  %596 = vdwg.mxu0
  %v597 = vld [vmem:[%s3] sm:$0xff]
  %v598 = vld [vmem:[%s4] sm:$0xff]
  %v599 = vadd.f32 %v510, %v512
  %v600 = vadd.f32 %v599, %v587
  %v601 = vadd.f32 %v600, %v589
  %602 = vadd.xlane.f32.xlu0 %v601
  %v603 = vpop.xlane.xlu0 %602
  %v604 = vrcp.pop 512.0
  %v605 = vmul.f32 %v603, %v604
  %v606 = vmul.f32 %v510, %v510
  %v607 = vmul.f32 %v512, %v512
  %v608 = vmul.f32 %v587, %v587
  %v609 = vmul.f32 %v589, %v589
  %v610 = vadd.f32 %v606, %v607
  %v611 = vadd.f32 %v610, %v608
  %v612 = vadd.f32 %v611, %v609
  %613 = vadd.xlane.f32.xlu0 %v612
  %v614 = vpop.xlane.xlu0 %613
  %v615 = vmul.f32 %v614, %v604
  %v616 = vmul.f32 %v605, %v605
  %v617 = vsub.f32 %v615, %v616
  %v618 = vadd.f32 %v617, 1e-05
  %v619 = vrsqrt.pop %v618
  %v620 = vmul.f32 %v597, %v619
  %v621 = vmul.f32 %v605, %v620
  %v622 = vsub.f32 %v598, %v621
  %624 = vset.pattern.permute.xlu0 0
  %625 = vperm.xlu0 %624, %v620
  %v626 = vpop.permute.xlu0 %625
  %v628 = vmul.f32 %v510, %v626
  %v629 = vmul.f32 %v512, %v626
  %v630 = vmul.f32 %v587, %v626
  %v631 = vmul.f32 %v589, %v626
  %633 = vset.pattern.permute.xlu0 0
  %634 = vperm.xlu0 %633, %v622
  %v635 = vpop.permute.xlu0 %634
  %v637 = vadd.f32 %v628, %v635
  %v638 = vadd.f32 %v629, %v635
  %v639 = vadd.f32 %v630, %v635
  %v640 = vadd.f32 %v631, %v635
  %v641 = vmax.f32 %v637, 0.0
  %v642 = vmax.f32 %v638, 0.0
  %v643 = vmax.f32 %v639, 0.0
  %v644 = vmax.f32 %v640, 0.0
  %v645 = vld [vmem:[%s11] sm:$0xff]
  %647 = vset.pattern.permute.xlu0 0
  %648 = vperm.xlu0 %647, %v645
  %v649 = vpop.permute.xlu0 %648
  %v651 = vadd.f32 %v516, %v649
  %v652 = vadd.f32 %v518, %v649
  %v653 = vadd.f32 %v593, %v649
  %v654 = vadd.f32 %v595, %v649
  %vm655 = vcmp.ge.s32.totalorder %v45, 2
  %vm656 = vcmp.lt.s32.totalorder %v45, 14
  %vm657 = vcmp.ge.s32.totalorder %v47, 2
  %vm658 = vcmp.lt.s32.totalorder %v47, 14
  %659 = vrot.lane.b32.xlu0 %v641, 34
  %v660 = vpop.permute.xlu0 %659
  %661 = vrot.lane.b32.xlu0 %v642, 34
  %v662 = vpop.permute.xlu0 %661
  %663 = vrot.lane.b32.xlu0 %v643, 34
  %v664 = vpop.permute.xlu0 %663
  %665 = vrot.lane.b32.xlu0 %v644, 34
  %v666 = vpop.permute.xlu0 %665
  %vm667 = vcmp.lt.s32.totalorder %v61, 34
  %v668 = vsel %vm667, %v664, %v666
  %v669 = vsel %vm667, %v662, %v664
  %v670 = vsel %vm667, %v660, %v662
  %v671 = vsel %vm667, %v666, %v660
  %vm672 = vmand %vm655, %vm657
  %v673 = vsel %vm672, 1, 0
  %v674 = vlaneseq
  %v675 = vshrl.u32 %v674, 7
  %v676 = vsub.s32 0, %v675
  %v677 = vrot.slane %v673, %v676
  %v678 = vlaneseq
  %v679 = vshrl.u32 %v678, 7
  %v680 = vsub.s32 1, %v679
  %v681 = vrot.slane %v673, %v680
  %v682 = vlaneseq
  %v683 = vshrl.u32 %v682, 7
  %v684 = vsub.s32 2, %v683
  %v685 = vrot.slane %v673, %v684
  %v686 = vlaneseq
  %v687 = vshrl.u32 %v686, 7
  %v688 = vsub.s32 3, %v687
  %v689 = vrot.slane %v673, %v688
  %vm690 = vcmp.eq.s32.totalorder %v677, 1
  %vm691 = vcmp.eq.s32.totalorder %v681, 1
  %vm692 = vcmp.eq.s32.totalorder %v685, 1
  %vm693 = vcmp.eq.s32.totalorder %v689, 1
  %v694 = vsel %vm690, %v671, 0.0
  %v695 = vsel %vm691, %v670, 0.0
  %v696 = vsel %vm692, %v669, 0.0
  %v697 = vsel %vm693, %v668, 0.0
  %698 = vst [vmem:[#allocation2] sm:$0xff] %v694
  %699 = vst [vmem:[#allocation2 + $0x8] sm:$0xff] %v695
  %700 = vst [vmem:[#allocation2 + $0x10] sm:$0xff] %v696
  %701 = vst [vmem:[#allocation2 + $0x18] sm:$0xff] %v697
  %702 = vrot.lane.b32.xlu0 %v641, 32
  %v703 = vpop.permute.xlu0 %702
  %704 = vrot.lane.b32.xlu0 %v642, 32
  %v705 = vpop.permute.xlu0 %704
  %706 = vrot.lane.b32.xlu0 %v643, 32
  %v707 = vpop.permute.xlu0 %706
  %708 = vrot.lane.b32.xlu0 %v644, 32
  %v709 = vpop.permute.xlu0 %708
  %vm710 = vcmp.lt.s32.totalorder %v61, 32
  %v711 = vsel %vm710, %v707, %v709
  %v712 = vsel %vm710, %v705, %v707
  %v713 = vsel %vm710, %v703, %v705
  %v714 = vsel %vm710, %v709, %v703
  %v715 = vsel %vm655, 1, 0
  %v716 = vlaneseq
  %v717 = vshrl.u32 %v716, 7
  %v718 = vsub.s32 0, %v717
  %v719 = vrot.slane %v715, %v718
  %v720 = vlaneseq
  %v721 = vshrl.u32 %v720, 7
  %v722 = vsub.s32 1, %v721
  %v723 = vrot.slane %v715, %v722
  %v724 = vlaneseq
  %v725 = vshrl.u32 %v724, 7
  %v726 = vsub.s32 2, %v725
  %v727 = vrot.slane %v715, %v726
  %v728 = vlaneseq
  %v729 = vshrl.u32 %v728, 7
  %v730 = vsub.s32 3, %v729
  %v731 = vrot.slane %v715, %v730
  %vm732 = vcmp.eq.s32.totalorder %v719, 1
  %vm733 = vcmp.eq.s32.totalorder %v723, 1
  %vm734 = vcmp.eq.s32.totalorder %v727, 1
  %vm735 = vcmp.eq.s32.totalorder %v731, 1
  %v736 = vsel %vm732, %v714, 0.0
  %v737 = vsel %vm733, %v713, 0.0
  %v738 = vsel %vm734, %v712, 0.0
  %v739 = vsel %vm735, %v711, 0.0
  %740 = vst [vmem:[#allocation2 + $0x20] sm:$0xff] %v736
  %741 = vst [vmem:[#allocation2 + $0x28] sm:$0xff] %v737
  %742 = vst [vmem:[#allocation2 + $0x30] sm:$0xff] %v738
  %743 = vst [vmem:[#allocation2 + $0x38] sm:$0xff] %v739
  %744 = vrot.lane.b32.xlu0 %v641, 30
  %v745 = vpop.permute.xlu0 %744
  %746 = vrot.lane.b32.xlu0 %v642, 30
  %v747 = vpop.permute.xlu0 %746
  %748 = vrot.lane.b32.xlu0 %v643, 30
  %v749 = vpop.permute.xlu0 %748
  %750 = vrot.lane.b32.xlu0 %v644, 30
  %v751 = vpop.permute.xlu0 %750
  %vm752 = vcmp.lt.s32.totalorder %v61, 30
  %v753 = vsel %vm752, %v749, %v751
  %v754 = vsel %vm752, %v747, %v749
  %v755 = vsel %vm752, %v745, %v747
  %v756 = vsel %vm752, %v751, %v745
  %vm757 = vmand %vm655, %vm658
  %v758 = vsel %vm757, 1, 0
  %v759 = vlaneseq
  %v760 = vshrl.u32 %v759, 7
  %v761 = vsub.s32 0, %v760
  %v762 = vrot.slane %v758, %v761
  %v763 = vlaneseq
  %v764 = vshrl.u32 %v763, 7
  %v765 = vsub.s32 1, %v764
  %v766 = vrot.slane %v758, %v765
  %v767 = vlaneseq
  %v768 = vshrl.u32 %v767, 7
  %v769 = vsub.s32 2, %v768
  %v770 = vrot.slane %v758, %v769
  %v771 = vlaneseq
  %v772 = vshrl.u32 %v771, 7
  %v773 = vsub.s32 3, %v772
  %v774 = vrot.slane %v758, %v773
  %vm775 = vcmp.eq.s32.totalorder %v762, 1
  %vm776 = vcmp.eq.s32.totalorder %v766, 1
  %vm777 = vcmp.eq.s32.totalorder %v770, 1
  %vm778 = vcmp.eq.s32.totalorder %v774, 1
  %v779 = vsel %vm775, %v756, 0.0
  %v780 = vsel %vm776, %v755, 0.0
  %v781 = vsel %vm777, %v754, 0.0
  %v782 = vsel %vm778, %v753, 0.0
  %783 = vst [vmem:[#allocation2 + $0x40] sm:$0xff] %v779
  %784 = vst [vmem:[#allocation2 + $0x48] sm:$0xff] %v780
  %785 = vst [vmem:[#allocation2 + $0x50] sm:$0xff] %v781
  %786 = vst [vmem:[#allocation2 + $0x58] sm:$0xff] %v782
  %787 = vrot.lane.b32.xlu0 %v641, 2
  %v788 = vpop.permute.xlu0 %787
  %789 = vrot.lane.b32.xlu0 %v642, 2
  %v790 = vpop.permute.xlu0 %789
  %791 = vrot.lane.b32.xlu0 %v643, 2
  %v792 = vpop.permute.xlu0 %791
  %793 = vrot.lane.b32.xlu0 %v644, 2
  %v794 = vpop.permute.xlu0 %793
  %vm795 = vcmp.lt.s32.totalorder %v61, 2
  %v796 = vsel %vm795, %v792, %v794
  %v797 = vsel %vm795, %v790, %v792
  %v798 = vsel %vm795, %v788, %v790
  %v799 = vsel %vm795, %v794, %v788
  %v800 = vsel %vm657, 1, 0
  %v801 = vlaneseq
  %v802 = vshrl.u32 %v801, 7
  %v803 = vsub.s32 0, %v802
  %v804 = vrot.slane %v800, %v803
  %v805 = vlaneseq
  %v806 = vshrl.u32 %v805, 7
  %v807 = vsub.s32 1, %v806
  %v808 = vrot.slane %v800, %v807
  %v809 = vlaneseq
  %v810 = vshrl.u32 %v809, 7
  %v811 = vsub.s32 2, %v810
  %v812 = vrot.slane %v800, %v811
  %v813 = vlaneseq
  %v814 = vshrl.u32 %v813, 7
  %v815 = vsub.s32 3, %v814
  %v816 = vrot.slane %v800, %v815
  %vm817 = vcmp.eq.s32.totalorder %v804, 1
  %vm818 = vcmp.eq.s32.totalorder %v808, 1
  %vm819 = vcmp.eq.s32.totalorder %v812, 1
  %vm820 = vcmp.eq.s32.totalorder %v816, 1
  %v821 = vsel %vm817, %v799, 0.0
  %v822 = vsel %vm818, %v798, 0.0
  %v823 = vsel %vm819, %v797, 0.0
  %v824 = vsel %vm820, %v796, 0.0
  %825 = vst [vmem:[#allocation2 + $0x60] sm:$0xff] %v821
  %826 = vst [vmem:[#allocation2 + $0x68] sm:$0xff] %v822
  %827 = vst [vmem:[#allocation2 + $0x70] sm:$0xff] %v823
  %828 = vst [vmem:[#allocation2 + $0x78] sm:$0xff] %v824
  %829 = vst [vmem:[#allocation2 + $0x80] sm:$0xff] %v641
  %830 = vst [vmem:[#allocation2 + $0x88] sm:$0xff] %v642
  %831 = vst [vmem:[#allocation2 + $0x90] sm:$0xff] %v643
  %832 = vst [vmem:[#allocation2 + $0x98] sm:$0xff] %v644
  %833 = vrot.lane.b32.xlu0 %v641, 126
  %v834 = vpop.permute.xlu0 %833
  %835 = vrot.lane.b32.xlu0 %v642, 126
  %v836 = vpop.permute.xlu0 %835
  %837 = vrot.lane.b32.xlu0 %v643, 126
  %v838 = vpop.permute.xlu0 %837
  %839 = vrot.lane.b32.xlu0 %v644, 126
  %v840 = vpop.permute.xlu0 %839
  %vm841 = vcmp.lt.s32.totalorder %v61, 126
  %v842 = vsel %vm841, %v838, %v840
  %v843 = vsel %vm841, %v836, %v838
  %v844 = vsel %vm841, %v834, %v836
  %v845 = vsel %vm841, %v840, %v834
  %v846 = vsel %vm658, 1, 0
  %v847 = vlaneseq
  %v848 = vshrl.u32 %v847, 7
  %v849 = vsub.s32 0, %v848
  %v850 = vrot.slane %v846, %v849
  %v851 = vlaneseq
  %v852 = vshrl.u32 %v851, 7
  %v853 = vsub.s32 1, %v852
  %v854 = vrot.slane %v846, %v853
  %v855 = vlaneseq
  %v856 = vshrl.u32 %v855, 7
  %v857 = vsub.s32 2, %v856
  %v858 = vrot.slane %v846, %v857
  %v859 = vlaneseq
  %v860 = vshrl.u32 %v859, 7
  %v861 = vsub.s32 3, %v860
  %v862 = vrot.slane %v846, %v861
  %vm863 = vcmp.eq.s32.totalorder %v850, 1
  %vm864 = vcmp.eq.s32.totalorder %v854, 1
  %vm865 = vcmp.eq.s32.totalorder %v858, 1
  %vm866 = vcmp.eq.s32.totalorder %v862, 1
  %v867 = vsel %vm863, %v844, 0.0
  %v868 = vsel %vm864, %v843, 0.0
  %v869 = vsel %vm865, %v842, 0.0
  %v870 = vsel %vm866, %v845, 0.0
  %871 = vst [vmem:[#allocation2 + $0xa0] sm:$0xff] %v867
  %872 = vst [vmem:[#allocation2 + $0xa8] sm:$0xff] %v868
  %873 = vst [vmem:[#allocation2 + $0xb0] sm:$0xff] %v869
  %874 = vst [vmem:[#allocation2 + $0xb8] sm:$0xff] %v870
  %875 = vrot.lane.b32.xlu0 %v641, 98
  %v876 = vpop.permute.xlu0 %875
  %877 = vrot.lane.b32.xlu0 %v642, 98
  %v878 = vpop.permute.xlu0 %877
  %879 = vrot.lane.b32.xlu0 %v643, 98
  %v880 = vpop.permute.xlu0 %879
  %881 = vrot.lane.b32.xlu0 %v644, 98
  %v882 = vpop.permute.xlu0 %881
  %vm883 = vcmp.lt.s32.totalorder %v61, 98
  %v884 = vsel %vm883, %v880, %v882
  %v885 = vsel %vm883, %v878, %v880
  %v886 = vsel %vm883, %v876, %v878
  %v887 = vsel %vm883, %v882, %v876
  %vm888 = vmand %vm656, %vm657
  %v889 = vsel %vm888, 1, 0
  %v890 = vlaneseq
  %v891 = vshrl.u32 %v890, 7
  %v892 = vsub.s32 0, %v891
  %v893 = vrot.slane %v889, %v892
  %v894 = vlaneseq
  %v895 = vshrl.u32 %v894, 7
  %v896 = vsub.s32 1, %v895
  %v897 = vrot.slane %v889, %v896
  %v898 = vlaneseq
  %v899 = vshrl.u32 %v898, 7
  %v900 = vsub.s32 2, %v899
  %v901 = vrot.slane %v889, %v900
  %v902 = vlaneseq
  %v903 = vshrl.u32 %v902, 7
  %v904 = vsub.s32 3, %v903
  %v905 = vrot.slane %v889, %v904
  %vm906 = vcmp.eq.s32.totalorder %v893, 1
  %vm907 = vcmp.eq.s32.totalorder %v897, 1
  %vm908 = vcmp.eq.s32.totalorder %v901, 1
  %vm909 = vcmp.eq.s32.totalorder %v905, 1
  %v910 = vsel %vm906, %v886, 0.0
  %v911 = vsel %vm907, %v885, 0.0
  %v912 = vsel %vm908, %v884, 0.0
  %v913 = vsel %vm909, %v887, 0.0
  %914 = vst [vmem:[#allocation2 + $0xc0] sm:$0xff] %v910
  %915 = vst [vmem:[#allocation2 + $0xc8] sm:$0xff] %v911
  %916 = vst [vmem:[#allocation2 + $0xd0] sm:$0xff] %v912
  %917 = vst [vmem:[#allocation2 + $0xd8] sm:$0xff] %v913
  %918 = vrot.lane.b32.xlu0 %v641, 96
  %v919 = vpop.permute.xlu0 %918
  %920 = vrot.lane.b32.xlu0 %v642, 96
  %v921 = vpop.permute.xlu0 %920
  %922 = vrot.lane.b32.xlu0 %v643, 96
  %v923 = vpop.permute.xlu0 %922
  %924 = vrot.lane.b32.xlu0 %v644, 96
  %v925 = vpop.permute.xlu0 %924
  %vm926 = vcmp.lt.s32.totalorder %v61, 96
  %v927 = vsel %vm926, %v923, %v925
  %v928 = vsel %vm926, %v921, %v923
  %v929 = vsel %vm926, %v919, %v921
  %v930 = vsel %vm926, %v925, %v919
  %v931 = vsel %vm656, 1, 0
  %v932 = vlaneseq
  %v933 = vshrl.u32 %v932, 7
  %v934 = vsub.s32 0, %v933
  %v935 = vrot.slane %v931, %v934
  %v936 = vlaneseq
  %v937 = vshrl.u32 %v936, 7
  %v938 = vsub.s32 1, %v937
  %v939 = vrot.slane %v931, %v938
  %v940 = vlaneseq
  %v941 = vshrl.u32 %v940, 7
  %v942 = vsub.s32 2, %v941
  %v943 = vrot.slane %v931, %v942
  %v944 = vlaneseq
  %v945 = vshrl.u32 %v944, 7
  %v946 = vsub.s32 3, %v945
  %v947 = vrot.slane %v931, %v946
  %vm948 = vcmp.eq.s32.totalorder %v935, 1
  %vm949 = vcmp.eq.s32.totalorder %v939, 1
  %vm950 = vcmp.eq.s32.totalorder %v943, 1
  %vm951 = vcmp.eq.s32.totalorder %v947, 1
  %v952 = vsel %vm948, %v929, 0.0
  %v953 = vsel %vm949, %v928, 0.0
  %v954 = vsel %vm950, %v927, 0.0
  %v955 = vsel %vm951, %v930, 0.0
  %956 = vst [vmem:[#allocation2 + $0xe0] sm:$0xff] %v952
  %957 = vst [vmem:[#allocation2 + $0xe8] sm:$0xff] %v953
  %958 = vst [vmem:[#allocation2 + $0xf0] sm:$0xff] %v954
  %959 = vst [vmem:[#allocation2 + $0xf8] sm:$0xff] %v955
  %960 = vrot.lane.b32.xlu0 %v641, 94
  %v961 = vpop.permute.xlu0 %960
  %962 = vrot.lane.b32.xlu0 %v642, 94
  %v963 = vpop.permute.xlu0 %962
  %964 = vrot.lane.b32.xlu0 %v643, 94
  %v965 = vpop.permute.xlu0 %964
  %966 = vrot.lane.b32.xlu0 %v644, 94
  %v967 = vpop.permute.xlu0 %966
  %vm968 = vcmp.lt.s32.totalorder %v61, 94
  %v969 = vsel %vm968, %v965, %v967
  %v970 = vsel %vm968, %v963, %v965
  %v971 = vsel %vm968, %v961, %v963
  %v972 = vsel %vm968, %v967, %v961
  %vm973 = vmand %vm656, %vm658
  %v974 = vsel %vm973, 1, 0
  %v975 = vlaneseq
  %v976 = vshrl.u32 %v975, 7
  %v977 = vsub.s32 0, %v976
  %v978 = vrot.slane %v974, %v977
  %v979 = vlaneseq
  %v980 = vshrl.u32 %v979, 7
  %v981 = vsub.s32 1, %v980
  %v982 = vrot.slane %v974, %v981
  %v983 = vlaneseq
  %v984 = vshrl.u32 %v983, 7
  %v985 = vsub.s32 2, %v984
  %v986 = vrot.slane %v974, %v985
  %v987 = vlaneseq
  %v988 = vshrl.u32 %v987, 7
  %v989 = vsub.s32 3, %v988
  %v990 = vrot.slane %v974, %v989
  %vm991 = vcmp.eq.s32.totalorder %v978, 1
  %vm992 = vcmp.eq.s32.totalorder %v982, 1
  %vm993 = vcmp.eq.s32.totalorder %v986, 1
  %vm994 = vcmp.eq.s32.totalorder %v990, 1
  %v995 = vsel %vm991, %v971, 0.0
  %v996 = vsel %vm992, %v970, 0.0
  %v997 = vsel %vm993, %v969, 0.0
  %v998 = vsel %vm994, %v972, 0.0
  %999 = vst [vmem:[#allocation2 + $0x100] sm:$0xff] %v995
  %1000 = vst [vmem:[#allocation2 + $0x108] sm:$0xff] %v996
  %1001 = vst [vmem:[#allocation2 + $0x110] sm:$0xff] %v997
  %1002 = vst [vmem:[#allocation2 + $0x118] sm:$0xff] %v998
  %v1003 = vld [vmem:[#allocation2] sm:$0xff]
  %v1004 = vld [vmem:[#allocation2 + $0x8] sm:$0xff]
  %v1005 = vld [vmem:[#allocation2 + $0x10] sm:$0xff]
  %v1006 = vld [vmem:[#allocation2 + $0x18] sm:$0xff]
  %v1007 = vld [vmem:[#allocation2 + $0x20] sm:$0xff]
  %v1008 = vld [vmem:[#allocation2 + $0x28] sm:$0xff]
  %v1009 = vld [vmem:[#allocation2 + $0x30] sm:$0xff]
  %v1010 = vld [vmem:[#allocation2 + $0x38] sm:$0xff]
  %v1011 = vld [vmem:[#allocation2 + $0x40] sm:$0xff]
  %v1012 = vld [vmem:[#allocation2 + $0x48] sm:$0xff]
  %v1013 = vld [vmem:[#allocation2 + $0x50] sm:$0xff]
  %v1014 = vld [vmem:[#allocation2 + $0x58] sm:$0xff]
  %v1015 = vld [vmem:[#allocation2 + $0x60] sm:$0xff]
  %v1016 = vld [vmem:[#allocation2 + $0x68] sm:$0xff]
  %v1017 = vld [vmem:[#allocation2 + $0x70] sm:$0xff]
  %v1018 = vld [vmem:[#allocation2 + $0x78] sm:$0xff]
  %v1019 = vld [vmem:[#allocation2 + $0x80] sm:$0xff]
  %v1020 = vld [vmem:[#allocation2 + $0x88] sm:$0xff]
  %v1021 = vld [vmem:[#allocation2 + $0x90] sm:$0xff]
  %v1022 = vld [vmem:[#allocation2 + $0x98] sm:$0xff]
  %v1023 = vld [vmem:[#allocation2 + $0xa0] sm:$0xff]
  %v1024 = vld [vmem:[#allocation2 + $0xa8] sm:$0xff]
  %v1025 = vld [vmem:[#allocation2 + $0xb0] sm:$0xff]
  %v1026 = vld [vmem:[#allocation2 + $0xb8] sm:$0xff]
  %v1027 = vld [vmem:[#allocation2 + $0xc0] sm:$0xff]
  %v1028 = vld [vmem:[#allocation2 + $0xc8] sm:$0xff]
  %v1029 = vld [vmem:[#allocation2 + $0xd0] sm:$0xff]
  %v1030 = vld [vmem:[#allocation2 + $0xd8] sm:$0xff]
  %v1031 = vld [vmem:[#allocation2 + $0xe0] sm:$0xff]
  %v1032 = vld [vmem:[#allocation2 + $0xe8] sm:$0xff]
  %v1033 = vld [vmem:[#allocation2 + $0xf0] sm:$0xff]
  %v1034 = vld [vmem:[#allocation2 + $0xf8] sm:$0xff]
  %v1035 = vld [vmem:[#allocation2 + $0x100] sm:$0xff]
  %v1036 = vld [vmem:[#allocation2 + $0x108] sm:$0xff]
  %v1037 = vld [vmem:[#allocation2 + $0x110] sm:$0xff]
  %v1038 = vld [vmem:[#allocation2 + $0x118] sm:$0xff]
  %v1039 = vld [vmem:[%s5] sm:$0xff]
  %v1041 = vsel %vm436, %v1039, 0
  %1043 = vmatprep.subr.mxu0 %v1004
  %1044 = vmatpush1.msra.mxu0 %v1003
  %1045 = vmatprep.subr.mxu0 %v1008
  %1046 = vmatpush1.msra.mxu0 %v1007
  %1047 = vmatprep.subr.mxu0 %v1012
  %1048 = vmatpush1.msra.mxu0 %v1011
  %1049 = vmatprep.subr.mxu0 %v1016
  %1050 = vmatpush1.msra.mxu0 %v1015
  %1051 = vmatprep.subr.mxu0 %v1020
  %1052 = vmatpush1.msra.mxu0 %v1019
  %1053 = vmatprep.subr.mxu0 %v1024
  %1054 = vmatpush1.msra.mxu0 %v1023
  %1055 = vmatprep.subr.mxu0 %v1028
  %1056 = vmatpush1.msra.mxu0 %v1027
  %1057 = vmatprep.subr.mxu0 %v1032
  %1058 = vmatpush1.msra.mxu0 %v1031
  %1059 = vmatprep.subr.mxu0 %v1036
  %1060 = vmatpush1.msra.mxu0 %v1035
  %1061 = vmatprep.subr.mxu0 0.0
  %1062 = vmatpush1.msra.mxu0 0.0
  %1063 = vmatprep.subr.mxu0 0.0
  %1064 = vmatpush1.msra.mxu0 0.0
  %1065 = vmatprep.subr.mxu0 0.0
  %1066 = vmatpush1.msra.mxu0 0.0
  %1067 = vmatprep.subr.mxu0 0.0
  %1068 = vmatpush1.msra.mxu0 0.0
  %1069 = vmatprep.subr.mxu0 0.0
  %1070 = vmatpush1.msra.mxu0 0.0
  %1071 = vmatprep.subr.mxu0 0.0
  %1072 = vmatpush1.msra.mxu0 0.0
  %1073 = vmatprep.subr.mxu0 0.0
  %1074 = vmatpush1.msra.mxu0 0.0
  %1075 = vmatprep.subr.mxu0 0.0
  %1076 = vmatpush1.msra.mxu0 0.0
  %1077 = vmatprep.subr.mxu0 0.0
  %1078 = vmatpush1.msra.mxu0 0.0
  %1079 = vmatprep.subr.mxu0 0.0
  %1080 = vmatpush1.msra.mxu0 0.0
  %1081 = vmatprep.subr.mxu0 0.0
  %1082 = vmatpush1.msra.mxu0 0.0
  %1083 = vmatprep.subr.mxu0 0.0
  %1084 = vmatpush1.msra.mxu0 0.0
  %1085 = vmatprep.subr.mxu0 0.0
  %1086 = vmatpush1.msra.mxu0 0.0
  %1087 = vmatprep.subr.mxu0 0.0
  %1088 = vmatpush1.msra.mxu0 0.0
  %1089 = vmatprep.subr.mxu0 0.0
  %1090 = vmatpush1.msra.mxu0 0.0
  %1091 = vmatprep.subr.mxu0 0.0
  %1092 = vmatpush1.msra.mxu0 0.0
  %1093 = vmatprep.subr.mxu0 0.0
  %1094 = vmatpush1.msra.mxu0 0.0
  %1095 = vmatprep.subr.mxu0 0.0
  %1096 = vmatpush1.msra.mxu0 0.0
  %1097 = vmatprep.subr.mxu0 0.0
  %1098 = vmatpush1.msra.mxu0 0.0
  %1099 = vmatprep.subr.mxu0 0.0
  %1100 = vmatpush1.msra.mxu0 0.0
  %1101 = vmatprep.subr.mxu0 0.0
  %1102 = vmatpush1.msra.mxu0 0.0
  %1103 = vmatprep.subr.mxu0 0.0
  %1104 = vmatpush1.msra.mxu0 0.0
  %1105 = vmatprep.subr.mxu0 0.0
  %1106 = vmatpush1.msra.mxu0 0.0
  %1107 = vmatprep.mubr.f32.mxu0 0.0
  %1108 = vmatmul.mubr.f32.gmra.mrb[0].mxu0 %v1041
  %v1109 = vpop.f32.mrb[0].mxu0
  %v1110 = vadd.f32 0.0, %v1109
  %v1111 = vpop.f32.mrb[0].mxu0
  %v1112 = vadd.f32 0.0, %v1111
  %1113 = vdwg.mxu0
  %1114 = vmatprep.subr.mxu0 %v1006
  %1115 = vmatpush1.msra.mxu0 %v1005
  %1116 = vmatprep.subr.mxu0 %v1010
  %1117 = vmatpush1.msra.mxu0 %v1009
  %1118 = vmatprep.subr.mxu0 %v1014
  %1119 = vmatpush1.msra.mxu0 %v1013
  %1120 = vmatprep.subr.mxu0 %v1018
  %1121 = vmatpush1.msra.mxu0 %v1017
  %1122 = vmatprep.subr.mxu0 %v1022
  %1123 = vmatpush1.msra.mxu0 %v1021
  %1124 = vmatprep.subr.mxu0 %v1026
  %1125 = vmatpush1.msra.mxu0 %v1025
  %1126 = vmatprep.subr.mxu0 %v1030
  %1127 = vmatpush1.msra.mxu0 %v1029
  %1128 = vmatprep.subr.mxu0 %v1034
  %1129 = vmatpush1.msra.mxu0 %v1033
  %1130 = vmatprep.subr.mxu0 %v1038
  %1131 = vmatpush1.msra.mxu0 %v1037
  %1132 = vmatprep.subr.mxu0 0.0
  %1133 = vmatpush1.msra.mxu0 0.0
  %1134 = vmatprep.subr.mxu0 0.0
  %1135 = vmatpush1.msra.mxu0 0.0
  %1136 = vmatprep.subr.mxu0 0.0
  %1137 = vmatpush1.msra.mxu0 0.0
  %1138 = vmatprep.subr.mxu0 0.0
  %1139 = vmatpush1.msra.mxu0 0.0
  %1140 = vmatprep.subr.mxu0 0.0
  %1141 = vmatpush1.msra.mxu0 0.0
  %1142 = vmatprep.subr.mxu0 0.0
  %1143 = vmatpush1.msra.mxu0 0.0
  %1144 = vmatprep.subr.mxu0 0.0
  %1145 = vmatpush1.msra.mxu0 0.0
  %1146 = vmatprep.subr.mxu0 0.0
  %1147 = vmatpush1.msra.mxu0 0.0
  %1148 = vmatprep.subr.mxu0 0.0
  %1149 = vmatpush1.msra.mxu0 0.0
  %1150 = vmatprep.subr.mxu0 0.0
  %1151 = vmatpush1.msra.mxu0 0.0
  %1152 = vmatprep.subr.mxu0 0.0
  %1153 = vmatpush1.msra.mxu0 0.0
  %1154 = vmatprep.subr.mxu0 0.0
  %1155 = vmatpush1.msra.mxu0 0.0
  %1156 = vmatprep.subr.mxu0 0.0
  %1157 = vmatpush1.msra.mxu0 0.0
  %1158 = vmatprep.subr.mxu0 0.0
  %1159 = vmatpush1.msra.mxu0 0.0
  %1160 = vmatprep.subr.mxu0 0.0
  %1161 = vmatpush1.msra.mxu0 0.0
  %1162 = vmatprep.subr.mxu0 0.0
  %1163 = vmatpush1.msra.mxu0 0.0
  %1164 = vmatprep.subr.mxu0 0.0
  %1165 = vmatpush1.msra.mxu0 0.0
  %1166 = vmatprep.subr.mxu0 0.0
  %1167 = vmatpush1.msra.mxu0 0.0
  %1168 = vmatprep.subr.mxu0 0.0
  %1169 = vmatpush1.msra.mxu0 0.0
  %1170 = vmatprep.subr.mxu0 0.0
  %1171 = vmatpush1.msra.mxu0 0.0
  %1172 = vmatprep.subr.mxu0 0.0
  %1173 = vmatpush1.msra.mxu0 0.0
  %1174 = vmatprep.subr.mxu0 0.0
  %1175 = vmatpush1.msra.mxu0 0.0
  %1176 = vmatprep.subr.mxu0 0.0
  %1177 = vmatpush1.msra.mxu0 0.0
  %1178 = vmatprep.mubr.f32.mxu0 0.0
  %1179 = vmatmul.mubr.f32.gmra.mrb[0].mxu0 %v1041
  %v1180 = vpop.f32.mrb[0].mxu0
  %v1181 = vadd.f32 0.0, %v1180
  %v1182 = vpop.f32.mrb[0].mxu0
  %v1183 = vadd.f32 0.0, %v1182
  %1184 = vdwg.mxu0
  %v1185 = vld [vmem:[%s6] sm:$0xff]
  %v1186 = vld [vmem:[%s7] sm:$0xff]
  %v1187 = vadd.f32 %v1110, %v1112
  %v1188 = vadd.f32 %v1187, %v1181
  %v1189 = vadd.f32 %v1188, %v1183
  %1190 = vadd.xlane.f32.xlu0 %v1189
  %v1191 = vpop.xlane.xlu0 %1190
  %v1192 = vmul.f32 %v1191, %v604
  %v1193 = vmul.f32 %v1110, %v1110
  %v1194 = vmul.f32 %v1112, %v1112
  %v1195 = vmul.f32 %v1181, %v1181
  %v1196 = vmul.f32 %v1183, %v1183
  %v1197 = vadd.f32 %v1193, %v1194
  %v1198 = vadd.f32 %v1197, %v1195
  %v1199 = vadd.f32 %v1198, %v1196
  %1200 = vadd.xlane.f32.xlu0 %v1199
  %v1201 = vpop.xlane.xlu0 %1200
  %v1202 = vmul.f32 %v1201, %v604
  %v1203 = vmul.f32 %v1192, %v1192
  %v1204 = vsub.f32 %v1202, %v1203
  %v1205 = vadd.f32 %v1204, 1e-05
  %v1206 = vrsqrt.pop %v1205
  %v1207 = vmul.f32 %v1185, %v1206
  %v1208 = vmul.f32 %v1192, %v1207
  %v1209 = vsub.f32 %v1186, %v1208
  %1211 = vset.pattern.permute.xlu0 0
  %1212 = vperm.xlu0 %1211, %v1207
  %v1213 = vpop.permute.xlu0 %1212
  %v1215 = vmul.f32 %v1110, %v1213
  %v1216 = vmul.f32 %v1112, %v1213
  %v1217 = vmul.f32 %v1181, %v1213
  %v1218 = vmul.f32 %v1183, %v1213
  %1220 = vset.pattern.permute.xlu0 0
  %1221 = vperm.xlu0 %1220, %v1209
  %v1222 = vpop.permute.xlu0 %1221
  %v1224 = vadd.f32 %v1215, %v1222
  %v1225 = vadd.f32 %v1216, %v1222
  %v1226 = vadd.f32 %v1217, %v1222
  %v1227 = vadd.f32 %v1218, %v1222
  %v1228 = vmax.f32 %v1224, 0.0
  %v1229 = vmax.f32 %v1225, 0.0
  %v1230 = vmax.f32 %v1226, 0.0
  %v1231 = vmax.f32 %v1227, 0.0
  %1232 = vrot.lane.b32.xlu0 %v1228, 34
  %v1233 = vpop.permute.xlu0 %1232
  %1234 = vrot.lane.b32.xlu0 %v1229, 34
  %v1235 = vpop.permute.xlu0 %1234
  %1236 = vrot.lane.b32.xlu0 %v1230, 34
  %v1237 = vpop.permute.xlu0 %1236
  %1238 = vrot.lane.b32.xlu0 %v1231, 34
  %v1239 = vpop.permute.xlu0 %1238
  %v1240 = vsel %vm667, %v1237, %v1239
  %v1241 = vsel %vm667, %v1235, %v1237
  %v1242 = vsel %vm667, %v1233, %v1235
  %v1243 = vsel %vm667, %v1239, %v1233
  %v1244 = vsel %vm690, %v1243, 0.0
  %v1245 = vsel %vm691, %v1242, 0.0
  %v1246 = vsel %vm692, %v1241, 0.0
  %v1247 = vsel %vm693, %v1240, 0.0
  %1248 = vst [vmem:[#allocation2] sm:$0xff] %v1244
  %1249 = vst [vmem:[#allocation2 + $0x8] sm:$0xff] %v1245
  %1250 = vst [vmem:[#allocation2 + $0x10] sm:$0xff] %v1246
  %1251 = vst [vmem:[#allocation2 + $0x18] sm:$0xff] %v1247
  %1252 = vrot.lane.b32.xlu0 %v1228, 32
  %v1253 = vpop.permute.xlu0 %1252
  %1254 = vrot.lane.b32.xlu0 %v1229, 32
  %v1255 = vpop.permute.xlu0 %1254
  %1256 = vrot.lane.b32.xlu0 %v1230, 32
  %v1257 = vpop.permute.xlu0 %1256
  %1258 = vrot.lane.b32.xlu0 %v1231, 32
  %v1259 = vpop.permute.xlu0 %1258
  %v1260 = vsel %vm710, %v1257, %v1259
  %v1261 = vsel %vm710, %v1255, %v1257
  %v1262 = vsel %vm710, %v1253, %v1255
  %v1263 = vsel %vm710, %v1259, %v1253
  %v1264 = vsel %vm732, %v1263, 0.0
  %v1265 = vsel %vm733, %v1262, 0.0
  %v1266 = vsel %vm734, %v1261, 0.0
  %v1267 = vsel %vm735, %v1260, 0.0
  %1268 = vst [vmem:[#allocation2 + $0x20] sm:$0xff] %v1264
  %1269 = vst [vmem:[#allocation2 + $0x28] sm:$0xff] %v1265
  %1270 = vst [vmem:[#allocation2 + $0x30] sm:$0xff] %v1266
  %1271 = vst [vmem:[#allocation2 + $0x38] sm:$0xff] %v1267
  %1272 = vrot.lane.b32.xlu0 %v1228, 30
  %v1273 = vpop.permute.xlu0 %1272
  %1274 = vrot.lane.b32.xlu0 %v1229, 30
  %v1275 = vpop.permute.xlu0 %1274
  %1276 = vrot.lane.b32.xlu0 %v1230, 30
  %v1277 = vpop.permute.xlu0 %1276
  %1278 = vrot.lane.b32.xlu0 %v1231, 30
  %v1279 = vpop.permute.xlu0 %1278
  %v1280 = vsel %vm752, %v1277, %v1279
  %v1281 = vsel %vm752, %v1275, %v1277
  %v1282 = vsel %vm752, %v1273, %v1275
  %v1283 = vsel %vm752, %v1279, %v1273
  %v1284 = vsel %vm775, %v1283, 0.0
  %v1285 = vsel %vm776, %v1282, 0.0
  %v1286 = vsel %vm777, %v1281, 0.0
  %v1287 = vsel %vm778, %v1280, 0.0
  %1288 = vst [vmem:[#allocation2 + $0x40] sm:$0xff] %v1284
  %1289 = vst [vmem:[#allocation2 + $0x48] sm:$0xff] %v1285
  %1290 = vst [vmem:[#allocation2 + $0x50] sm:$0xff] %v1286
  %1291 = vst [vmem:[#allocation2 + $0x58] sm:$0xff] %v1287
  %1292 = vrot.lane.b32.xlu0 %v1228, 2
  %v1293 = vpop.permute.xlu0 %1292
  %1294 = vrot.lane.b32.xlu0 %v1229, 2
  %v1295 = vpop.permute.xlu0 %1294
  %1296 = vrot.lane.b32.xlu0 %v1230, 2
  %v1297 = vpop.permute.xlu0 %1296
  %1298 = vrot.lane.b32.xlu0 %v1231, 2
  %v1299 = vpop.permute.xlu0 %1298
  %v1300 = vsel %vm795, %v1297, %v1299
  %v1301 = vsel %vm795, %v1295, %v1297
  %v1302 = vsel %vm795, %v1293, %v1295
  %v1303 = vsel %vm795, %v1299, %v1293
  %v1304 = vsel %vm817, %v1303, 0.0
  %v1305 = vsel %vm818, %v1302, 0.0
  %v1306 = vsel %vm819, %v1301, 0.0
  %v1307 = vsel %vm820, %v1300, 0.0
  %1308 = vst [vmem:[#allocation2 + $0x60] sm:$0xff] %v1304
  %1309 = vst [vmem:[#allocation2 + $0x68] sm:$0xff] %v1305
  %1310 = vst [vmem:[#allocation2 + $0x70] sm:$0xff] %v1306
  %1311 = vst [vmem:[#allocation2 + $0x78] sm:$0xff] %v1307
  %1312 = vst [vmem:[#allocation2 + $0x80] sm:$0xff] %v1228
  %1313 = vst [vmem:[#allocation2 + $0x88] sm:$0xff] %v1229
  %1314 = vst [vmem:[#allocation2 + $0x90] sm:$0xff] %v1230
  %1315 = vst [vmem:[#allocation2 + $0x98] sm:$0xff] %v1231
  %1316 = vrot.lane.b32.xlu0 %v1228, 126
  %v1317 = vpop.permute.xlu0 %1316
  %1318 = vrot.lane.b32.xlu0 %v1229, 126
  %v1319 = vpop.permute.xlu0 %1318
  %1320 = vrot.lane.b32.xlu0 %v1230, 126
  %v1321 = vpop.permute.xlu0 %1320
  %1322 = vrot.lane.b32.xlu0 %v1231, 126
  %v1323 = vpop.permute.xlu0 %1322
  %v1324 = vsel %vm841, %v1321, %v1323
  %v1325 = vsel %vm841, %v1319, %v1321
  %v1326 = vsel %vm841, %v1317, %v1319
  %v1327 = vsel %vm841, %v1323, %v1317
  %v1328 = vsel %vm863, %v1326, 0.0
  %v1329 = vsel %vm864, %v1325, 0.0
  %v1330 = vsel %vm865, %v1324, 0.0
  %v1331 = vsel %vm866, %v1327, 0.0
  %1332 = vst [vmem:[#allocation2 + $0xa0] sm:$0xff] %v1328
  %1333 = vst [vmem:[#allocation2 + $0xa8] sm:$0xff] %v1329
  %1334 = vst [vmem:[#allocation2 + $0xb0] sm:$0xff] %v1330
  %1335 = vst [vmem:[#allocation2 + $0xb8] sm:$0xff] %v1331
  %1336 = vrot.lane.b32.xlu0 %v1228, 98
  %v1337 = vpop.permute.xlu0 %1336
  %1338 = vrot.lane.b32.xlu0 %v1229, 98
  %v1339 = vpop.permute.xlu0 %1338
  %1340 = vrot.lane.b32.xlu0 %v1230, 98
  %v1341 = vpop.permute.xlu0 %1340
  %1342 = vrot.lane.b32.xlu0 %v1231, 98
  %v1343 = vpop.permute.xlu0 %1342
  %v1344 = vsel %vm883, %v1341, %v1343
  %v1345 = vsel %vm883, %v1339, %v1341
  %v1346 = vsel %vm883, %v1337, %v1339
  %v1347 = vsel %vm883, %v1343, %v1337
  %v1348 = vsel %vm906, %v1346, 0.0
  %v1349 = vsel %vm907, %v1345, 0.0
  %v1350 = vsel %vm908, %v1344, 0.0
  %v1351 = vsel %vm909, %v1347, 0.0
  %1352 = vst [vmem:[#allocation2 + $0xc0] sm:$0xff] %v1348
  %1353 = vst [vmem:[#allocation2 + $0xc8] sm:$0xff] %v1349
  %1354 = vst [vmem:[#allocation2 + $0xd0] sm:$0xff] %v1350
  %1355 = vst [vmem:[#allocation2 + $0xd8] sm:$0xff] %v1351
  %1356 = vrot.lane.b32.xlu0 %v1228, 96
  %v1357 = vpop.permute.xlu0 %1356
  %1358 = vrot.lane.b32.xlu0 %v1229, 96
  %v1359 = vpop.permute.xlu0 %1358
  %1360 = vrot.lane.b32.xlu0 %v1230, 96
  %v1361 = vpop.permute.xlu0 %1360
  %1362 = vrot.lane.b32.xlu0 %v1231, 96
  %v1363 = vpop.permute.xlu0 %1362
  %v1364 = vsel %vm926, %v1361, %v1363
  %v1365 = vsel %vm926, %v1359, %v1361
  %v1366 = vsel %vm926, %v1357, %v1359
  %v1367 = vsel %vm926, %v1363, %v1357
  %v1368 = vsel %vm948, %v1366, 0.0
  %v1369 = vsel %vm949, %v1365, 0.0
  %v1370 = vsel %vm950, %v1364, 0.0
  %v1371 = vsel %vm951, %v1367, 0.0
  %1372 = vst [vmem:[#allocation2 + $0xe0] sm:$0xff] %v1368
  %1373 = vst [vmem:[#allocation2 + $0xe8] sm:$0xff] %v1369
  %1374 = vst [vmem:[#allocation2 + $0xf0] sm:$0xff] %v1370
  %1375 = vst [vmem:[#allocation2 + $0xf8] sm:$0xff] %v1371
  %1376 = vrot.lane.b32.xlu0 %v1228, 94
  %v1377 = vpop.permute.xlu0 %1376
  %1378 = vrot.lane.b32.xlu0 %v1229, 94
  %v1379 = vpop.permute.xlu0 %1378
  %1380 = vrot.lane.b32.xlu0 %v1230, 94
  %v1381 = vpop.permute.xlu0 %1380
  %1382 = vrot.lane.b32.xlu0 %v1231, 94
  %v1383 = vpop.permute.xlu0 %1382
  %v1384 = vsel %vm968, %v1381, %v1383
  %v1385 = vsel %vm968, %v1379, %v1381
  %v1386 = vsel %vm968, %v1377, %v1379
  %v1387 = vsel %vm968, %v1383, %v1377
  %v1388 = vsel %vm991, %v1386, 0.0
  %v1389 = vsel %vm992, %v1385, 0.0
  %v1390 = vsel %vm993, %v1384, 0.0
  %v1391 = vsel %vm994, %v1387, 0.0
  %1392 = vst [vmem:[#allocation2 + $0x100] sm:$0xff] %v1388
  %1393 = vst [vmem:[#allocation2 + $0x108] sm:$0xff] %v1389
  %1394 = vst [vmem:[#allocation2 + $0x110] sm:$0xff] %v1390
  %1395 = vst [vmem:[#allocation2 + $0x118] sm:$0xff] %v1391
  %v1396 = vld [vmem:[#allocation2] sm:$0xff]
  %v1397 = vld [vmem:[#allocation2 + $0x8] sm:$0xff]
  %v1398 = vld [vmem:[#allocation2 + $0x10] sm:$0xff]
  %v1399 = vld [vmem:[#allocation2 + $0x18] sm:$0xff]
  %v1400 = vld [vmem:[#allocation2 + $0x20] sm:$0xff]
  %v1401 = vld [vmem:[#allocation2 + $0x28] sm:$0xff]
  %v1402 = vld [vmem:[#allocation2 + $0x30] sm:$0xff]
  %v1403 = vld [vmem:[#allocation2 + $0x38] sm:$0xff]
  %v1404 = vld [vmem:[#allocation2 + $0x40] sm:$0xff]
  %v1405 = vld [vmem:[#allocation2 + $0x48] sm:$0xff]
  %v1406 = vld [vmem:[#allocation2 + $0x50] sm:$0xff]
  %v1407 = vld [vmem:[#allocation2 + $0x58] sm:$0xff]
  %v1408 = vld [vmem:[#allocation2 + $0x60] sm:$0xff]
  %v1409 = vld [vmem:[#allocation2 + $0x68] sm:$0xff]
  %v1410 = vld [vmem:[#allocation2 + $0x70] sm:$0xff]
  %v1411 = vld [vmem:[#allocation2 + $0x78] sm:$0xff]
  %v1412 = vld [vmem:[#allocation2 + $0x80] sm:$0xff]
  %v1413 = vld [vmem:[#allocation2 + $0x88] sm:$0xff]
  %v1414 = vld [vmem:[#allocation2 + $0x90] sm:$0xff]
  %v1415 = vld [vmem:[#allocation2 + $0x98] sm:$0xff]
  %v1416 = vld [vmem:[#allocation2 + $0xa0] sm:$0xff]
  %v1417 = vld [vmem:[#allocation2 + $0xa8] sm:$0xff]
  %v1418 = vld [vmem:[#allocation2 + $0xb0] sm:$0xff]
  %v1419 = vld [vmem:[#allocation2 + $0xb8] sm:$0xff]
  %v1420 = vld [vmem:[#allocation2 + $0xc0] sm:$0xff]
  %v1421 = vld [vmem:[#allocation2 + $0xc8] sm:$0xff]
  %v1422 = vld [vmem:[#allocation2 + $0xd0] sm:$0xff]
  %v1423 = vld [vmem:[#allocation2 + $0xd8] sm:$0xff]
  %v1424 = vld [vmem:[#allocation2 + $0xe0] sm:$0xff]
  %v1425 = vld [vmem:[#allocation2 + $0xe8] sm:$0xff]
  %v1426 = vld [vmem:[#allocation2 + $0xf0] sm:$0xff]
  %v1427 = vld [vmem:[#allocation2 + $0xf8] sm:$0xff]
  %v1428 = vld [vmem:[#allocation2 + $0x100] sm:$0xff]
  %v1429 = vld [vmem:[#allocation2 + $0x108] sm:$0xff]
  %v1430 = vld [vmem:[#allocation2 + $0x110] sm:$0xff]
  %v1431 = vld [vmem:[#allocation2 + $0x118] sm:$0xff]
  %v1432 = vld [vmem:[%s8] sm:$0xff]
  %v1434 = vsel %vm436, %v1432, 0
  %1436 = vmatprep.subr.mxu0 %v1397
  %1437 = vmatpush1.msra.mxu0 %v1396
  %1438 = vmatprep.subr.mxu0 %v1401
  %1439 = vmatpush1.msra.mxu0 %v1400
  %1440 = vmatprep.subr.mxu0 %v1405
  %1441 = vmatpush1.msra.mxu0 %v1404
  %1442 = vmatprep.subr.mxu0 %v1409
  %1443 = vmatpush1.msra.mxu0 %v1408
  %1444 = vmatprep.subr.mxu0 %v1413
  %1445 = vmatpush1.msra.mxu0 %v1412
  %1446 = vmatprep.subr.mxu0 %v1417
  %1447 = vmatpush1.msra.mxu0 %v1416
  %1448 = vmatprep.subr.mxu0 %v1421
  %1449 = vmatpush1.msra.mxu0 %v1420
  %1450 = vmatprep.subr.mxu0 %v1425
  %1451 = vmatpush1.msra.mxu0 %v1424
  %1452 = vmatprep.subr.mxu0 %v1429
  %1453 = vmatpush1.msra.mxu0 %v1428
  %1454 = vmatprep.subr.mxu0 0.0
  %1455 = vmatpush1.msra.mxu0 0.0
  %1456 = vmatprep.subr.mxu0 0.0
  %1457 = vmatpush1.msra.mxu0 0.0
  %1458 = vmatprep.subr.mxu0 0.0
  %1459 = vmatpush1.msra.mxu0 0.0
  %1460 = vmatprep.subr.mxu0 0.0
  %1461 = vmatpush1.msra.mxu0 0.0
  %1462 = vmatprep.subr.mxu0 0.0
  %1463 = vmatpush1.msra.mxu0 0.0
  %1464 = vmatprep.subr.mxu0 0.0
  %1465 = vmatpush1.msra.mxu0 0.0
  %1466 = vmatprep.subr.mxu0 0.0
  %1467 = vmatpush1.msra.mxu0 0.0
  %1468 = vmatprep.subr.mxu0 0.0
  %1469 = vmatpush1.msra.mxu0 0.0
  %1470 = vmatprep.subr.mxu0 0.0
  %1471 = vmatpush1.msra.mxu0 0.0
  %1472 = vmatprep.subr.mxu0 0.0
  %1473 = vmatpush1.msra.mxu0 0.0
  %1474 = vmatprep.subr.mxu0 0.0
  %1475 = vmatpush1.msra.mxu0 0.0
  %1476 = vmatprep.subr.mxu0 0.0
  %1477 = vmatpush1.msra.mxu0 0.0
  %1478 = vmatprep.subr.mxu0 0.0
  %1479 = vmatpush1.msra.mxu0 0.0
  %1480 = vmatprep.subr.mxu0 0.0
  %1481 = vmatpush1.msra.mxu0 0.0
  %1482 = vmatprep.subr.mxu0 0.0
  %1483 = vmatpush1.msra.mxu0 0.0
  %1484 = vmatprep.subr.mxu0 0.0
  %1485 = vmatpush1.msra.mxu0 0.0
  %1486 = vmatprep.subr.mxu0 0.0
  %1487 = vmatpush1.msra.mxu0 0.0
  %1488 = vmatprep.subr.mxu0 0.0
  %1489 = vmatpush1.msra.mxu0 0.0
  %1490 = vmatprep.subr.mxu0 0.0
  %1491 = vmatpush1.msra.mxu0 0.0
  %1492 = vmatprep.subr.mxu0 0.0
  %1493 = vmatpush1.msra.mxu0 0.0
  %1494 = vmatprep.subr.mxu0 0.0
  %1495 = vmatpush1.msra.mxu0 0.0
  %1496 = vmatprep.subr.mxu0 0.0
  %1497 = vmatpush1.msra.mxu0 0.0
  %1498 = vmatprep.subr.mxu0 0.0
  %1499 = vmatpush1.msra.mxu0 0.0
  %1500 = vmatprep.mubr.f32.mxu0 0.0
  %1501 = vmatmul.mubr.f32.gmra.mrb[0].mxu0 %v1434
  %v1502 = vpop.f32.mrb[0].mxu0
  %v1503 = vadd.f32 0.0, %v1502
  %v1504 = vpop.f32.mrb[0].mxu0
  %v1505 = vadd.f32 0.0, %v1504
  %1506 = vdwg.mxu0
  %1507 = vmatprep.subr.mxu0 %v1399
  %1508 = vmatpush1.msra.mxu0 %v1398
  %1509 = vmatprep.subr.mxu0 %v1403
  %1510 = vmatpush1.msra.mxu0 %v1402
  %1511 = vmatprep.subr.mxu0 %v1407
  %1512 = vmatpush1.msra.mxu0 %v1406
  %1513 = vmatprep.subr.mxu0 %v1411
  %1514 = vmatpush1.msra.mxu0 %v1410
  %1515 = vmatprep.subr.mxu0 %v1415
  %1516 = vmatpush1.msra.mxu0 %v1414
  %1517 = vmatprep.subr.mxu0 %v1419
  %1518 = vmatpush1.msra.mxu0 %v1418
  %1519 = vmatprep.subr.mxu0 %v1423
  %1520 = vmatpush1.msra.mxu0 %v1422
  %1521 = vmatprep.subr.mxu0 %v1427
  %1522 = vmatpush1.msra.mxu0 %v1426
  %1523 = vmatprep.subr.mxu0 %v1431
  %1524 = vmatpush1.msra.mxu0 %v1430
  %1525 = vmatprep.subr.mxu0 0.0
  %1526 = vmatpush1.msra.mxu0 0.0
  %1527 = vmatprep.subr.mxu0 0.0
  %1528 = vmatpush1.msra.mxu0 0.0
  %1529 = vmatprep.subr.mxu0 0.0
  %1530 = vmatpush1.msra.mxu0 0.0
  %1531 = vmatprep.subr.mxu0 0.0
  %1532 = vmatpush1.msra.mxu0 0.0
  %1533 = vmatprep.subr.mxu0 0.0
  %1534 = vmatpush1.msra.mxu0 0.0
  %1535 = vmatprep.subr.mxu0 0.0
  %1536 = vmatpush1.msra.mxu0 0.0
  %1537 = vmatprep.subr.mxu0 0.0
  %1538 = vmatpush1.msra.mxu0 0.0
  %1539 = vmatprep.subr.mxu0 0.0
  %1540 = vmatpush1.msra.mxu0 0.0
  %1541 = vmatprep.subr.mxu0 0.0
  %1542 = vmatpush1.msra.mxu0 0.0
  %1543 = vmatprep.subr.mxu0 0.0
  %1544 = vmatpush1.msra.mxu0 0.0
  %1545 = vmatprep.subr.mxu0 0.0
  %1546 = vmatpush1.msra.mxu0 0.0
  %1547 = vmatprep.subr.mxu0 0.0
  %1548 = vmatpush1.msra.mxu0 0.0
  %1549 = vmatprep.subr.mxu0 0.0
  %1550 = vmatpush1.msra.mxu0 0.0
  %1551 = vmatprep.subr.mxu0 0.0
  %1552 = vmatpush1.msra.mxu0 0.0
  %1553 = vmatprep.subr.mxu0 0.0
  %1554 = vmatpush1.msra.mxu0 0.0
  %1555 = vmatprep.subr.mxu0 0.0
  %1556 = vmatpush1.msra.mxu0 0.0
  %1557 = vmatprep.subr.mxu0 0.0
  %1558 = vmatpush1.msra.mxu0 0.0
  %1559 = vmatprep.subr.mxu0 0.0
  %1560 = vmatpush1.msra.mxu0 0.0
  %1561 = vmatprep.subr.mxu0 0.0
  %1562 = vmatpush1.msra.mxu0 0.0
  %1563 = vmatprep.subr.mxu0 0.0
  %1564 = vmatpush1.msra.mxu0 0.0
  %1565 = vmatprep.subr.mxu0 0.0
  %1566 = vmatpush1.msra.mxu0 0.0
  %1567 = vmatprep.subr.mxu0 0.0
  %1568 = vmatpush1.msra.mxu0 0.0
  %1569 = vmatprep.subr.mxu0 0.0
  %1570 = vmatpush1.msra.mxu0 0.0
  %1571 = vmatprep.mubr.f32.mxu0 0.0
  %1572 = vmatmul.mubr.f32.gmra.mrb[0].mxu0 %v1434
  %v1573 = vpop.f32.mrb[0].mxu0
  %v1574 = vadd.f32 0.0, %v1573
  %v1575 = vpop.f32.mrb[0].mxu0
  %v1576 = vadd.f32 0.0, %v1575
  %1577 = vdwg.mxu0
  %v1578 = vld [vmem:[%s9] sm:$0xff]
  %v1579 = vld [vmem:[%s10] sm:$0xff]
  %v1580 = vadd.f32 %v1503, %v1505
  %v1581 = vadd.f32 %v1580, %v1574
  %v1582 = vadd.f32 %v1581, %v1576
  %1583 = vadd.xlane.f32.xlu0 %v1582
  %v1584 = vpop.xlane.xlu0 %1583
  %v1585 = vmul.f32 %v1584, %v604
  %v1586 = vmul.f32 %v1503, %v1503
  %v1587 = vmul.f32 %v1505, %v1505
  %v1588 = vmul.f32 %v1574, %v1574
  %v1589 = vmul.f32 %v1576, %v1576
  %v1590 = vadd.f32 %v1586, %v1587
  %v1591 = vadd.f32 %v1590, %v1588
  %v1592 = vadd.f32 %v1591, %v1589
  %1593 = vadd.xlane.f32.xlu0 %v1592
  %v1594 = vpop.xlane.xlu0 %1593
  %v1595 = vmul.f32 %v1594, %v604
  %v1596 = vmul.f32 %v1585, %v1585
  %v1597 = vsub.f32 %v1595, %v1596
  %v1598 = vadd.f32 %v1597, 1e-05
  %v1599 = vrsqrt.pop %v1598
  %v1600 = vmul.f32 %v1578, %v1599
  %v1601 = vmul.f32 %v1585, %v1600
  %v1602 = vsub.f32 %v1579, %v1601
  %1604 = vset.pattern.permute.xlu0 0
  %1605 = vperm.xlu0 %1604, %v1600
  %v1606 = vpop.permute.xlu0 %1605
  %v1608 = vmul.f32 %v1503, %v1606
  %v1609 = vmul.f32 %v1505, %v1606
  %v1610 = vmul.f32 %v1574, %v1606
  %v1611 = vmul.f32 %v1576, %v1606
  %1613 = vset.pattern.permute.xlu0 0
  %1614 = vperm.xlu0 %1613, %v1602
  %v1615 = vpop.permute.xlu0 %1614
  %v1617 = vadd.f32 %v1608, %v1615
  %v1618 = vadd.f32 %v1609, %v1615
  %v1619 = vadd.f32 %v1610, %v1615
  %v1620 = vadd.f32 %v1611, %v1615
  %v1621 = vadd.f32 %v1617, %v651
  %v1622 = vadd.f32 %v1618, %v652
  %v1623 = vadd.f32 %v1619, %v653
  %v1624 = vadd.f32 %v1620, %v654
  %v1625 = vmax.f32 %v1621, 0.0
  %v1626 = vmax.f32 %v1622, 0.0
  %v1627 = vmax.f32 %v1623, 0.0
  %v1628 = vmax.f32 %v1624, 0.0
  %1629 = vst [vmem:[%s12] sm:$0xff] %v1625
  %1630 = vst [vmem:[%s12 + $0x8] sm:$0xff] %v1626
  %1631 = vst [vmem:[%s12 + $0x10] sm:$0xff] %v1627
  %1632 = vst [vmem:[%s12 + $0x18] sm:$0xff] %v1628
  // Predicated region
  $region50: #{rdb2_forward.1} parent=0 // pred_check
    _
  $region51: #{rdb2_forward.1} parent=0 // pred_check_branch
    %1634 = sbr.rel (0) target = $region53
  $region52: #{rdb2_forward.1} parent=0 // pred_region
    _
  $region53: #{rdb2_forward.1} parent=0 // pred_fallthru
    _
  // Predicated region
  $region54: #{rdb2_forward.1} parent=0 // pred_check
    _
  $region55: #{rdb2_forward.1} parent=0 // pred_check_branch
    %1636 = sbr.rel (0) target = $region57
  $region56: #{rdb2_forward.1} parent=0 // pred_region
    _
  $region57: #{rdb2_forward.1} parent=0 // pred_fallthru
    _

</llo_original>
